<compile_context>
chip_gen: v6e
topology: v6e:2x2x1
jax: 0.10.0
libtpu: 0.0.40
codegen_flags: <defaults>
</compile_context>

<pallas_src>
import functools

import jax
import jax.numpy as jnp
import numpy as np
from jax import lax
from jax.experimental import pallas as pl
from jax.experimental.pallas import tpu as pltpu

BN_EPS = 1e-3
LANE = 128


def _round_up(x, m):
    return (x + m - 1) // m * m


# ---------------------------------------------------------------------------
# Fused kernel: for one batch row, run all `n_layers` masked conv+BN(+act) layers
# with VMEM ping-pong buffers, plus the residual 1x1 conv, residual add and final
# Hardtanh(0, 20).  Conv = sum over K taps of shifted (T, C) x (C, C) bf16 matmuls.
# ---------------------------------------------------------------------------
def _fused_jasper_kernel(lens_ref, x_ref, w_ref, shift_ref, wres_ref, shiftres_ref,
                         o_ref, buf_a, buf_b, *, n_layers, K, T, pad, CP):
    b = pl.program_id(0)
    length = lens_ref[b]                                   # valid length (same for all layers)

    # Zero the conv halos of both ping-pong buffers (middle rows are always overwritten).
    if pad > 0:
        zh = jnp.zeros((pad, CP), jnp.bfloat16)
        buf_a[0:pad, :] = zh
        buf_a[pad + T:pad + T + pad, :] = zh
        buf_b[0:pad, :] = zh
        buf_b[pad + T:pad + T + pad, :] = zh

    # MaskedConv1d: zero x at / beyond the valid length.
    t_idx = lax.broadcasted_iota(jnp.int32, (T, 1), 0)
    mask = t_idx < length                                  # (T, 1)
    xm = jnp.where(mask, x_ref[0], 0).astype(jnp.bfloat16)  # (T, CP) bf16

    # Residual branch: 1x1 conv (BN scale already folded into wres) -- bf16 MXU, f32 acc.
    res = jnp.dot(xm, wres_ref[0], preferred_element_type=jnp.float32) + shiftres_ref[...]

    # Stage the masked input into buffer A (real data lives at rows [pad, pad+T)).
    buf_a[pad:pad + T, :] = xm

    bufs = (buf_a, buf_b)
    y = None
    for i in range(n_layers):                              # static layer loop
        cur = bufs[i % 2]
        acc = jnp.zeros((T, CP), jnp.float32)
        # Static tap loop; unaligned sublane slices are acceptable for small K.
        # TODO(synk): consider a single (T, K*CP) x (K*CP, CP) matmul if slices show up
        #             as extra VMEM copies in the bundle dump.
        for k in range(K):
            acc = acc + jnp.dot(cur[k:k + T, :], w_ref[i * K + k],
                                preferred_element_type=jnp.float32)
        y = acc + shift_ref[i]                             # fused BatchNorm (eval) shift
        if i < n_layers - 1:
            y = jnp.clip(y, 0.0, 20.0)                     # Hardtanh(0, 20); dropout = identity
            nxt = bufs[(i + 1) % 2]
            nxt[pad:pad + T, :] = jnp.where(mask, y, 0.0).astype(jnp.bfloat16)

    # Residual add + final Hardtanh fused here (output stays unmasked, like PyTorch).
    o_ref[0] = jnp.clip(y + res, 0.0, 20.0).astype(o_ref.dtype)


def fused_jasper_block(x_nct, lens, w_stack, shift_stack, w_res, shift_res, *, pad, c_out):
    """x_nct: (B, Cin, T) f32.  w_stack: (L*K, CP, CP) bf16 (BN scale folded),
    shift_stack: (L, 1, CP) f32, w_res: (1, CP, CP) bf16, shift_res: (1, CP) f32."""
    B, Cin, T = x_nct.shape
    L = shift_stack.shape[0]
    LK, CP, _ = w_stack.shape
    K = LK // L
    assert K % 2 == 1 and pad == K // 2, "fused kernel assumes stride=1, dilation=1, 'same' pad"

    # NCT -> NTC (lane-dense channels), pad channels to a multiple of 128, cast to bf16.
    x = jnp.transpose(x_nct, (0, 2, 1))
    x = jnp.pad(x, ((0, 0), (0, 0), (0, CP - Cin))).astype(jnp.bfloat16)

    kernel = functools.partial(_fused_jasper_kernel,
                               n_layers=L, K=K, T=T, pad=pad, CP=CP)

    flops = 2 * B * T * CP * CP * (L * K + 1)
    bytes_accessed = int(x.size * 2 + w_stack.size * 2 + w_res.size * 2
                         + shift_stack.size * 4 + shift_res.size * 4
                         + B * T * CP * 4)

    out = pl.pallas_call(
        kernel,
        out_shape=jax.ShapeDtypeStruct((B, T, CP), jnp.float32),
        grid_spec=pltpu.PrefetchScalarGridSpec(
            num_scalar_prefetch=1,                         # lens -> SMEM
            grid=(B,),
            in_specs=[
                pl.BlockSpec((1, T, CP), lambda b, lens_r: (b, 0, 0)),
                pl.BlockSpec((LK, CP, CP), lambda b, lens_r: (0, 0, 0)),
                pl.BlockSpec((L, 1, CP), lambda b, lens_r: (0, 0, 0)),
                pl.BlockSpec((1, CP, CP), lambda b, lens_r: (0, 0, 0)),
                pl.BlockSpec((1, CP), lambda b, lens_r: (0, 0)),
            ],
            out_specs=pl.BlockSpec((1, T, CP), lambda b, lens_r: (b, 0, 0)),
            scratch_shapes=[pltpu.VMEM((T + 2 * pad, CP), jnp.bfloat16),
                            pltpu.VMEM((T + 2 * pad, CP), jnp.bfloat16)],
        ),
        compiler_params=pltpu.CompilerParams(
            dimension_semantics=("parallel",),
            vmem_limit_bytes=32 * 1024 * 1024,
        ),
        cost_estimate=pl.CostEstimate(flops=flops, transcendentals=0,
                                      bytes_accessed=bytes_accessed),
    )(lens, x, w_stack, shift_stack, w_res, shift_res)

    # MaskedConv1d.get_seq_len applied per layer (stride=1, dilation=1).
    new_lens = lens
    for _ in range(L):
        new_lens = (new_lens + 2 * pad - (K - 1) - 1) // 1 + 1

    out = out[:, :, :c_out]                                # crop channel padding
    return jnp.transpose(out, (0, 2, 1)), new_lens         # back to NCT at the boundary


# ---------------------------------------------------------------------------
# Parameter preparation: fold BN (eval) scale into weights, pad channels, cast bf16.
# ---------------------------------------------------------------------------
def _fold_bn(p):
    scale = p["gamma"] * jax.lax.rsqrt(p["var"] + BN_EPS)
    shift = p["beta"] - p["mean"] * scale
    return scale, shift


def prepare_block_params(params, CP):
    w_list, s_list = [], []
    for p in params["convs"]:
        scale, shift = _fold_bn(p)
        w = jnp.transpose(p["w"], (2, 1, 0)) * scale[None, None, :]   # (K, Cin, Cout) * scale
        _, ci, co = w.shape
        w = jnp.pad(w, ((0, 0), (0, CP - ci), (0, CP - co)))
        s_list.append(jnp.pad(shift, (0, CP - co)).reshape(1, CP))
        w_list.append(w)
    L, K = len(w_list), w_list[0].shape[0]
    w_stack = jnp.concatenate(w_list, axis=0).astype(jnp.bfloat16)    # (L*K, CP, CP)
    shift_stack = jnp.stack(s_list).astype(jnp.float32)               # (L, 1, CP)

    rp = params["res"]
    scale, shift = _fold_bn(rp)
    wr = jnp.transpose(rp["w"], (2, 1, 0)) * scale[None, None, :]
    _, ci, co = wr.shape
    wr = jnp.pad(wr, ((0, 0), (0, CP - ci), (0, CP - co))).astype(jnp.bfloat16)  # (1, CP, CP)
    sr = jnp.pad(shift, (0, CP - co)).astype(jnp.float32).reshape(1, CP)
    return w_stack, shift_stack, wr, sr


def jasper_block_forward(xs, lens, params, *, pad):
    # residual_panes=[] => single residual pane (xs[0] == xs[-1]); dense_residual=False
    assert len(xs) == 1  # TODO(synk): dense_residual / multiple residual panes not supported
    x = xs[0]
    Cin = x.shape[1]
    Cout = params["convs"][-1]["w"].shape[0]
    CP = _round_up(max(Cin, Cout), LANE)
    w_stack, shift_stack, w_res, shift_res = prepare_block_params(params, CP)
    out, new_lens = fused_jasper_block(x, lens, w_stack, shift_stack, w_res, shift_res,
                                       pad=pad, c_out=Cout)
    return [out], new_lens


# ---------------------------------------------------------------------------
# Pure-JAX reference using the same folded bf16 weights (mirrors the PyTorch math:
# mask -> conv -> BN -> Hardtanh, repeat; 1x1 residual on masked xs[0]; add; Hardtanh).
# ---------------------------------------------------------------------------
def ref_jasper_forward(x_nct, lens, w_stack, shift_stack, w_res, shift_res, *, pad, c_out):
    B, Cin, T = x_nct.shape
    L = shift_stack.shape[0]
    LK, CP, _ = w_stack.shape
    K = LK // L
    x = jnp.transpose(x_nct, (0, 2, 1))
    x = jnp.pad(x, ((0, 0), (0, 0), (0, CP - Cin))).astype(jnp.bfloat16)
    mask = jnp.arange(T)[None, :, None] < lens[:, None, None]
    cur = jnp.where(mask, x, 0).astype(jnp.bfloat16)
    x_res = cur
    out = None
    for i in range(L):
        xp = jnp.pad(cur, ((0, 0), (pad, pad), (0, 0)))
        acc = jnp.zeros((B, T, CP), jnp.float32)
        for k in range(K):
            acc = acc + jnp.einsum('btc,cd->btd', xp[:, k:k + T, :], w_stack[i * K + k],
                                   preferred_element_type=jnp.float32)
        y = acc + shift_stack[i][None]
        if i < L - 1:
            y = jnp.clip(y, 0.0, 20.0)
            cur = jnp.where(mask, y, 0.0).astype(jnp.bfloat16)
        else:
            out = y
    res = jnp.einsum('btc,cd->btd', x_res, w_res[0],
                     preferred_element_type=jnp.float32) + shift_res[None]
    out = jnp.clip(out + res, 0.0, 20.0)
    new_lens = lens
    for _ in range(L):
        new_lens = (new_lens + 2 * pad - (K - 1) - 1) // 1 + 1
    return jnp.transpose(out[:, :, :c_out], (0, 2, 1)), new_lens


# ---------------------------------------------------------------------------
def make_conv_bn(keys, cin, cout, k):
    kw, kg, kb, km, kv = keys
    return {
        "w": 0.1 * jax.random.normal(kw, (cout, cin, k), jnp.float32),  # OIH (PyTorch layout)
        "gamma": 1.0 + 0.1 * jax.random.normal(kg, (cout,), jnp.float32),
        "beta": 0.1 * jax.random.normal(kb, (cout,), jnp.float32),
        "mean": 0.1 * jax.random.normal(km, (cout,), jnp.float32),
        "var": 1.0 + 0.5 * jax.random.uniform(kv, (cout,), jnp.float32),
    }


if __name__ == "__main__":
    B, Cin, Cout, T, K, repeat = 2, 8, 16, 16, 5, 3
    pad = K // 2  # get_same_padding(5, 1, 1) = 2

    keys = jax.random.split(jax.random.PRNGKey(0), 5 * (repeat + 1) + 1)
    params = {"convs": [], "res": None}
    ki = 0
    c_in = Cin
    for _ in range(repeat):
        params["convs"].append(make_conv_bn(keys[ki:ki + 5], c_in, Cout, K))
        ki += 5
        c_in = Cout
    params["res"] = make_conv_bn(keys[ki:ki + 5], Cin, Cout, 1)
    ki += 5

    x = jax.random.normal(keys[ki], (B, Cin, T), jnp.float32)   # PyTorch NCT
    lens = jnp.array([T, 11], dtype=jnp.int32)

    outs, out_lens = jasper_block_forward([x], lens, params, pad=pad)
    out = jax.block_until_ready(outs[0])

    # Reference uses the same folded/padded bf16 weights so the comparison is tight.
    CP = _round_up(max(Cin, Cout), LANE)
    w_stack, shift_stack, w_res, shift_res = prepare_block_params(params, CP)
    ref_out, ref_lens = ref_jasper_forward(x, lens, w_stack, shift_stack, w_res, shift_res,
                                           pad=pad, c_out=Cout)

    np.testing.assert_allclose(np.asarray(out), np.asarray(ref_out), rtol=1e-3, atol=1e-3)
    assert np.array_equal(np.asarray(out_lens), np.asarray(ref_lens))
    assert out.shape == (B, Cout, T)
    assert out.dtype == jnp.float32

    print("KERNEL_OK")
</pallas_src>

<mosaic_0001>
module attributes {stable_mosaic.version = 11 : i64} {
  func.func @_fused_jasper_kernel(%arg0: i32, %arg1: memref<2xi32, #tpu.memory_space<smem>>, %arg2: memref<1x16x128xbf16, #tpu.memory_space<vmem>>, %arg3: memref<15x128x128xbf16, #tpu.memory_space<vmem>>, %arg4: memref<3x1x128xf32, #tpu.memory_space<vmem>>, %arg5: memref<1x128x128xbf16, #tpu.memory_space<vmem>>, %arg6: memref<1x128xf32, #tpu.memory_space<vmem>>, %arg7: memref<1x16x128xf32, #tpu.memory_space<vmem>>, %arg8: memref<20x128xbf16, #tpu.memory_space<vmem>>, %arg9: memref<20x128xbf16, #tpu.memory_space<vmem>>) attributes {dimension_semantics = [#tpu.dimension_semantics<parallel>], iteration_bounds = array<i64: 2>, scalar_prefetch = 1 : i64, scratch_operands = 2 : i64, tpu.core_type = #tpu.core_type<tc>, window_params = [{transform_indices = @transform_0, window_bounds = array<i64: 1, 16, 128>}, {pipeline_mode = #tpu.pipeline_mode<synchronous>, transform_indices = @transform_1, window_bounds = array<i64: 15, 128, 128>}, {pipeline_mode = #tpu.pipeline_mode<synchronous>, transform_indices = @transform_2, window_bounds = array<i64: 3, 1, 128>}, {pipeline_mode = #tpu.pipeline_mode<synchronous>, transform_indices = @transform_3, window_bounds = array<i64: 1, 128, 128>}, {pipeline_mode = #tpu.pipeline_mode<synchronous>, transform_indices = @transform_4, window_bounds = array<i64: 1, 128>}, {transform_indices = @transform_5, window_bounds = array<i64: 1, 16, 128>}]} {
    %0 = arith.index_cast %arg0 : i32 to index
    %1 = memref.load %arg1[%0] : memref<2xi32, #tpu.memory_space<smem>>
    %cst = arith.constant 0.000000e+00 : bf16
    %2 = vector.broadcast %cst : bf16 to vector<2x128xbf16>
    %c0 = arith.constant 0 : index
    %c0_0 = arith.constant 0 : index
    %3 = vector.load %arg8[%c0, %c0_0] : memref<20x128xbf16, #tpu.memory_space<vmem>>, vector<2x128xbf16>
    tpu.vector_store %arg8[%c0, %c0_0], %2 {strides = array<i32>} : memref<20x128xbf16, #tpu.memory_space<vmem>>, vector<2x128xbf16>,
    %c18 = arith.constant 18 : index
    %c0_1 = arith.constant 0 : index
    %4 = vector.load %arg8[%c18, %c0_1] : memref<20x128xbf16, #tpu.memory_space<vmem>>, vector<2x128xbf16>
    tpu.vector_store %arg8[%c18, %c0_1], %2 {strides = array<i32>} : memref<20x128xbf16, #tpu.memory_space<vmem>>, vector<2x128xbf16>,
    %c0_2 = arith.constant 0 : index
    %c0_3 = arith.constant 0 : index
    %5 = vector.load %arg9[%c0_2, %c0_3] : memref<20x128xbf16, #tpu.memory_space<vmem>>, vector<2x128xbf16>
    tpu.vector_store %arg9[%c0_2, %c0_3], %2 {strides = array<i32>} : memref<20x128xbf16, #tpu.memory_space<vmem>>, vector<2x128xbf16>,
    %c18_4 = arith.constant 18 : index
    %c0_5 = arith.constant 0 : index
    %6 = vector.load %arg9[%c18_4, %c0_5] : memref<20x128xbf16, #tpu.memory_space<vmem>>, vector<2x128xbf16>
    tpu.vector_store %arg9[%c18_4, %c0_5], %2 {strides = array<i32>} : memref<20x128xbf16, #tpu.memory_space<vmem>>, vector<2x128xbf16>,
    %7 = tpu.iota {dimensions = array<i32: 0>} : vector<16x1xi32>
    %8 = vector.broadcast %1 : i32 to vector<16x1xi32>
    %9 = arith.cmpi slt, %7, %8 : vector<16x1xi32>
    %c0_6 = arith.constant 0 : index
    %c0_7 = arith.constant 0 : index
    %c0_8 = arith.constant 0 : index
    %10 = vector.load %arg2[%c0_6, %c0_7, %c0_8] : memref<1x16x128xbf16, #tpu.memory_space<vmem>>, vector<1x16x128xbf16>
    %11 = vector.shape_cast %10 : vector<1x16x128xbf16> to vector<16x128xbf16>
    %c0_i32 = arith.constant 0 : i32
    %12 = arith.sitofp %c0_i32 : i32 to bf16
    %13 = vector.shape_cast %9 : vector<16x1xi1> to vector<16x1xi1>
    %14 = vector.broadcast %13 : vector<16x1xi1> to vector<16x128xi1>
    %15 = vector.broadcast %12 : bf16 to vector<16x128xbf16>
    %16 = arith.select %14, %11, %15 : vector<16x128xi1>, vector<16x128xbf16>
    %c0_9 = arith.constant 0 : index
    %c0_10 = arith.constant 0 : index
    %c0_11 = arith.constant 0 : index
    %17 = vector.load %arg5[%c0_9, %c0_10, %c0_11] : memref<1x128x128xbf16, #tpu.memory_space<vmem>>, vector<1x128x128xbf16>
    %18 = vector.shape_cast %17 : vector<1x128x128xbf16> to vector<128x128xbf16>
    %cst_12 = arith.constant dense<0.000000e+00> : vector<16x128xf32>
    %19 = tpu.matmul %16, %18, %cst_12 {dimension_numbers = #tpu.dot_dimension_numbers<[1], [0], [0], [1], [0, 0, 1, 1], [], []>} : vector<16x128xbf16>, vector<128x128xbf16>, vector<16x128xf32> -> vector<16x128xf32>
    %c0_13 = arith.constant 0 : index
    %c0_14 = arith.constant 0 : index
    %20 = vector.load %arg6[%c0_13, %c0_14] : memref<1x128xf32, #tpu.memory_space<vmem>>, vector<1x128xf32>
    %21 = vector.broadcast %20 : vector<1x128xf32> to vector<16x128xf32>
    %22 = arith.addf %19, %21 : vector<16x128xf32>
    %c2 = arith.constant 2 : index
    %c0_15 = arith.constant 0 : index
    %23 = vector.load %arg8[%c2, %c0_15] : memref<20x128xbf16, #tpu.memory_space<vmem>>, vector<16x128xbf16>
    tpu.vector_store %arg8[%c2, %c0_15], %16 {strides = array<i32>} : memref<20x128xbf16, #tpu.memory_space<vmem>>, vector<16x128xbf16>,
    %cst_16 = arith.constant 0.000000e+00 : f32
    %24 = vector.broadcast %cst_16 : f32 to vector<16x128xf32>
    %c0_17 = arith.constant 0 : index
    %c0_18 = arith.constant 0 : index
    %25 = vector.load %arg8[%c0_17, %c0_18] : memref<20x128xbf16, #tpu.memory_space<vmem>>, vector<16x128xbf16>
    %c0_19 = arith.constant 0 : index
    %c0_20 = arith.constant 0 : index
    %c0_21 = arith.constant 0 : index
    %26 = vector.load %arg3[%c0_19, %c0_20, %c0_21] : memref<15x128x128xbf16, #tpu.memory_space<vmem>>, vector<1x128x128xbf16>
    %27 = vector.shape_cast %26 : vector<1x128x128xbf16> to vector<128x128xbf16>
    %cst_22 = arith.constant dense<0.000000e+00> : vector<16x128xf32>
    %28 = tpu.matmul %25, %27, %cst_22 {dimension_numbers = #tpu.dot_dimension_numbers<[1], [0], [0], [1], [0, 0, 1, 1], [], []>} : vector<16x128xbf16>, vector<128x128xbf16>, vector<16x128xf32> -> vector<16x128xf32>
    %29 = arith.addf %24, %28 : vector<16x128xf32>
    %c1 = arith.constant 1 : index
    %c0_23 = arith.constant 0 : index
    %30 = vector.load %arg8[%c1, %c0_23] : memref<20x128xbf16, #tpu.memory_space<vmem>>, vector<16x128xbf16>
    %c1_24 = arith.constant 1 : index
    %c0_25 = arith.constant 0 : index
    %c0_26 = arith.constant 0 : index
    %31 = vector.load %arg3[%c1_24, %c0_25, %c0_26] : memref<15x128x128xbf16, #tpu.memory_space<vmem>>, vector<1x128x128xbf16>
    %32 = vector.shape_cast %31 : vector<1x128x128xbf16> to vector<128x128xbf16>
    %cst_27 = arith.constant dense<0.000000e+00> : vector<16x128xf32>
    %33 = tpu.matmul %30, %32, %cst_27 {dimension_numbers = #tpu.dot_dimension_numbers<[1], [0], [0], [1], [0, 0, 1, 1], [], []>} : vector<16x128xbf16>, vector<128x128xbf16>, vector<16x128xf32> -> vector<16x128xf32>
    %34 = arith.addf %29, %33 : vector<16x128xf32>
    %c2_28 = arith.constant 2 : index
    %c0_29 = arith.constant 0 : index
    %35 = vector.load %arg8[%c2_28, %c0_29] : memref<20x128xbf16, #tpu.memory_space<vmem>>, vector<16x128xbf16>
    %c2_30 = arith.constant 2 : index
    %c0_31 = arith.constant 0 : index
    %c0_32 = arith.constant 0 : index
    %36 = vector.load %arg3[%c2_30, %c0_31, %c0_32] : memref<15x128x128xbf16, #tpu.memory_space<vmem>>, vector<1x128x128xbf16>
    %37 = vector.shape_cast %36 : vector<1x128x128xbf16> to vector<128x128xbf16>
    %cst_33 = arith.constant dense<0.000000e+00> : vector<16x128xf32>
    %38 = tpu.matmul %35, %37, %cst_33 {dimension_numbers = #tpu.dot_dimension_numbers<[1], [0], [0], [1], [0, 0, 1, 1], [], []>} : vector<16x128xbf16>, vector<128x128xbf16>, vector<16x128xf32> -> vector<16x128xf32>
    %39 = arith.addf %34, %38 : vector<16x128xf32>
    %c3 = arith.constant 3 : index
    %c0_34 = arith.constant 0 : index
    %40 = vector.load %arg8[%c3, %c0_34] : memref<20x128xbf16, #tpu.memory_space<vmem>>, vector<16x128xbf16>
    %c3_35 = arith.constant 3 : index
    %c0_36 = arith.constant 0 : index
    %c0_37 = arith.constant 0 : index
    %41 = vector.load %arg3[%c3_35, %c0_36, %c0_37] : memref<15x128x128xbf16, #tpu.memory_space<vmem>>, vector<1x128x128xbf16>
    %42 = vector.shape_cast %41 : vector<1x128x128xbf16> to vector<128x128xbf16>
    %cst_38 = arith.constant dense<0.000000e+00> : vector<16x128xf32>
    %43 = tpu.matmul %40, %42, %cst_38 {dimension_numbers = #tpu.dot_dimension_numbers<[1], [0], [0], [1], [0, 0, 1, 1], [], []>} : vector<16x128xbf16>, vector<128x128xbf16>, vector<16x128xf32> -> vector<16x128xf32>
    %44 = arith.addf %39, %43 : vector<16x128xf32>
    %c4 = arith.constant 4 : index
    %c0_39 = arith.constant 0 : index
    %45 = vector.load %arg8[%c4, %c0_39] : memref<20x128xbf16, #tpu.memory_space<vmem>>, vector<16x128xbf16>
    %c4_40 = arith.constant 4 : index
    %c0_41 = arith.constant 0 : index
    %c0_42 = arith.constant 0 : index
    %46 = vector.load %arg3[%c4_40, %c0_41, %c0_42] : memref<15x128x128xbf16, #tpu.memory_space<vmem>>, vector<1x128x128xbf16>
    %47 = vector.shape_cast %46 : vector<1x128x128xbf16> to vector<128x128xbf16>
    %cst_43 = arith.constant dense<0.000000e+00> : vector<16x128xf32>
    %48 = tpu.matmul %45, %47, %cst_43 {dimension_numbers = #tpu.dot_dimension_numbers<[1], [0], [0], [1], [0, 0, 1, 1], [], []>} : vector<16x128xbf16>, vector<128x128xbf16>, vector<16x128xf32> -> vector<16x128xf32>
    %49 = arith.addf %44, %48 : vector<16x128xf32>
    %c0_44 = arith.constant 0 : index
    %c0_45 = arith.constant 0 : index
    %c0_46 = arith.constant 0 : index
    %50 = vector.load %arg4[%c0_44, %c0_45, %c0_46] : memref<3x1x128xf32, #tpu.memory_space<vmem>>, vector<1x1x128xf32>
    %51 = vector.shape_cast %50 : vector<1x1x128xf32> to vector<1x128xf32>
    %52 = vector.broadcast %51 : vector<1x128xf32> to vector<16x128xf32>
    %53 = arith.addf %49, %52 : vector<16x128xf32>
    %cst_47 = arith.constant 0.000000e+00 : f32
    %cst_48 = arith.constant 2.000000e+01 : f32
    %54 = vector.broadcast %cst_47 : f32 to vector<16x128xf32>
    %55 = arith.maximumf %54, %53 : vector<16x128xf32>
    %56 = vector.broadcast %cst_48 : f32 to vector<16x128xf32>
    %57 = arith.minimumf %56, %55 : vector<16x128xf32>
    %cst_49 = arith.constant 0.000000e+00 : f32
    %58 = vector.shape_cast %9 : vector<16x1xi1> to vector<16x1xi1>
    %59 = vector.broadcast %58 : vector<16x1xi1> to vector<16x128xi1>
    %60 = vector.broadcast %cst_49 : f32 to vector<16x128xf32>
    %61 = arith.select %59, %57, %60 : vector<16x128xi1>, vector<16x128xf32>
    %62 = arith.truncf %61 : vector<16x128xf32> to vector<16x128xbf16>
    %c2_50 = arith.constant 2 : index
    %c0_51 = arith.constant 0 : index
    %63 = vector.load %arg9[%c2_50, %c0_51] : memref<20x128xbf16, #tpu.memory_space<vmem>>, vector<16x128xbf16>
    tpu.vector_store %arg9[%c2_50, %c0_51], %62 {strides = array<i32>} : memref<20x128xbf16, #tpu.memory_space<vmem>>, vector<16x128xbf16>,
    %cst_52 = arith.constant 0.000000e+00 : f32
    %64 = vector.broadcast %cst_52 : f32 to vector<16x128xf32>
    %c0_53 = arith.constant 0 : index
    %c0_54 = arith.constant 0 : index
    %65 = vector.load %arg9[%c0_53, %c0_54] : memref<20x128xbf16, #tpu.memory_space<vmem>>, vector<16x128xbf16>
    %c5 = arith.constant 5 : index
    %c0_55 = arith.constant 0 : index
    %c0_56 = arith.constant 0 : index
    %66 = vector.load %arg3[%c5, %c0_55, %c0_56] : memref<15x128x128xbf16, #tpu.memory_space<vmem>>, vector<1x128x128xbf16>
    %67 = vector.shape_cast %66 : vector<1x128x128xbf16> to vector<128x128xbf16>
    %cst_57 = arith.constant dense<0.000000e+00> : vector<16x128xf32>
    %68 = tpu.matmul %65, %67, %cst_57 {dimension_numbers = #tpu.dot_dimension_numbers<[1], [0], [0], [1], [0, 0, 1, 1], [], []>} : vector<16x128xbf16>, vector<128x128xbf16>, vector<16x128xf32> -> vector<16x128xf32>
    %69 = arith.addf %64, %68 : vector<16x128xf32>
    %c1_58 = arith.constant 1 : index
    %c0_59 = arith.constant 0 : index
    %70 = vector.load %arg9[%c1_58, %c0_59] : memref<20x128xbf16, #tpu.memory_space<vmem>>, vector<16x128xbf16>
    %c6 = arith.constant 6 : index
    %c0_60 = arith.constant 0 : index
    %c0_61 = arith.constant 0 : index
    %71 = vector.load %arg3[%c6, %c0_60, %c0_61] : memref<15x128x128xbf16, #tpu.memory_space<vmem>>, vector<1x128x128xbf16>
    %72 = vector.shape_cast %71 : vector<1x128x128xbf16> to vector<128x128xbf16>
    %cst_62 = arith.constant dense<0.000000e+00> : vector<16x128xf32>
    %73 = tpu.matmul %70, %72, %cst_62 {dimension_numbers = #tpu.dot_dimension_numbers<[1], [0], [0], [1], [0, 0, 1, 1], [], []>} : vector<16x128xbf16>, vector<128x128xbf16>, vector<16x128xf32> -> vector<16x128xf32>
    %74 = arith.addf %69, %73 : vector<16x128xf32>
    %c2_63 = arith.constant 2 : index
    %c0_64 = arith.constant 0 : index
    %75 = vector.load %arg9[%c2_63, %c0_64] : memref<20x128xbf16, #tpu.memory_space<vmem>>, vector<16x128xbf16>
    %c7 = arith.constant 7 : index
    %c0_65 = arith.constant 0 : index
    %c0_66 = arith.constant 0 : index
    %76 = vector.load %arg3[%c7, %c0_65, %c0_66] : memref<15x128x128xbf16, #tpu.memory_space<vmem>>, vector<1x128x128xbf16>
    %77 = vector.shape_cast %76 : vector<1x128x128xbf16> to vector<128x128xbf16>
    %cst_67 = arith.constant dense<0.000000e+00> : vector<16x128xf32>
    %78 = tpu.matmul %75, %77, %cst_67 {dimension_numbers = #tpu.dot_dimension_numbers<[1], [0], [0], [1], [0, 0, 1, 1], [], []>} : vector<16x128xbf16>, vector<128x128xbf16>, vector<16x128xf32> -> vector<16x128xf32>
    %79 = arith.addf %74, %78 : vector<16x128xf32>
    %c3_68 = arith.constant 3 : index
    %c0_69 = arith.constant 0 : index
    %80 = vector.load %arg9[%c3_68, %c0_69] : memref<20x128xbf16, #tpu.memory_space<vmem>>, vector<16x128xbf16>
    %c8 = arith.constant 8 : index
    %c0_70 = arith.constant 0 : index
    %c0_71 = arith.constant 0 : index
    %81 = vector.load %arg3[%c8, %c0_70, %c0_71] : memref<15x128x128xbf16, #tpu.memory_space<vmem>>, vector<1x128x128xbf16>
    %82 = vector.shape_cast %81 : vector<1x128x128xbf16> to vector<128x128xbf16>
    %cst_72 = arith.constant dense<0.000000e+00> : vector<16x128xf32>
    %83 = tpu.matmul %80, %82, %cst_72 {dimension_numbers = #tpu.dot_dimension_numbers<[1], [0], [0], [1], [0, 0, 1, 1], [], []>} : vector<16x128xbf16>, vector<128x128xbf16>, vector<16x128xf32> -> vector<16x128xf32>
    %84 = arith.addf %79, %83 : vector<16x128xf32>
    %c4_73 = arith.constant 4 : index
    %c0_74 = arith.constant 0 : index
    %85 = vector.load %arg9[%c4_73, %c0_74] : memref<20x128xbf16, #tpu.memory_space<vmem>>, vector<16x128xbf16>
    %c9 = arith.constant 9 : index
    %c0_75 = arith.constant 0 : index
    %c0_76 = arith.constant 0 : index
    %86 = vector.load %arg3[%c9, %c0_75, %c0_76] : memref<15x128x128xbf16, #tpu.memory_space<vmem>>, vector<1x128x128xbf16>
    %87 = vector.shape_cast %86 : vector<1x128x128xbf16> to vector<128x128xbf16>
    %cst_77 = arith.constant dense<0.000000e+00> : vector<16x128xf32>
    %88 = tpu.matmul %85, %87, %cst_77 {dimension_numbers = #tpu.dot_dimension_numbers<[1], [0], [0], [1], [0, 0, 1, 1], [], []>} : vector<16x128xbf16>, vector<128x128xbf16>, vector<16x128xf32> -> vector<16x128xf32>
    %89 = arith.addf %84, %88 : vector<16x128xf32>
    %c1_78 = arith.constant 1 : index
    %c0_79 = arith.constant 0 : index
    %c0_80 = arith.constant 0 : index
    %90 = vector.load %arg4[%c1_78, %c0_79, %c0_80] : memref<3x1x128xf32, #tpu.memory_space<vmem>>, vector<1x1x128xf32>
    %91 = vector.shape_cast %90 : vector<1x1x128xf32> to vector<1x128xf32>
    %92 = vector.broadcast %91 : vector<1x128xf32> to vector<16x128xf32>
    %93 = arith.addf %89, %92 : vector<16x128xf32>
    %cst_81 = arith.constant 0.000000e+00 : f32
    %cst_82 = arith.constant 2.000000e+01 : f32
    %94 = vector.broadcast %cst_81 : f32 to vector<16x128xf32>
    %95 = arith.maximumf %94, %93 : vector<16x128xf32>
    %96 = vector.broadcast %cst_82 : f32 to vector<16x128xf32>
    %97 = arith.minimumf %96, %95 : vector<16x128xf32>
    %cst_83 = arith.constant 0.000000e+00 : f32
    %98 = vector.shape_cast %9 : vector<16x1xi1> to vector<16x1xi1>
    %99 = vector.broadcast %98 : vector<16x1xi1> to vector<16x128xi1>
    %100 = vector.broadcast %cst_83 : f32 to vector<16x128xf32>
    %101 = arith.select %99, %97, %100 : vector<16x128xi1>, vector<16x128xf32>
    %102 = arith.truncf %101 : vector<16x128xf32> to vector<16x128xbf16>
    %c2_84 = arith.constant 2 : index
    %c0_85 = arith.constant 0 : index
    %103 = vector.load %arg8[%c2_84, %c0_85] : memref<20x128xbf16, #tpu.memory_space<vmem>>, vector<16x128xbf16>
    tpu.vector_store %arg8[%c2_84, %c0_85], %102 {strides = array<i32>} : memref<20x128xbf16, #tpu.memory_space<vmem>>, vector<16x128xbf16>,
    %cst_86 = arith.constant 0.000000e+00 : f32
    %104 = vector.broadcast %cst_86 : f32 to vector<16x128xf32>
    %c0_87 = arith.constant 0 : index
    %c0_88 = arith.constant 0 : index
    %105 = vector.load %arg8[%c0_87, %c0_88] : memref<20x128xbf16, #tpu.memory_space<vmem>>, vector<16x128xbf16>
    %c10 = arith.constant 10 : index
    %c0_89 = arith.constant 0 : index
    %c0_90 = arith.constant 0 : index
    %106 = vector.load %arg3[%c10, %c0_89, %c0_90] : memref<15x128x128xbf16, #tpu.memory_space<vmem>>, vector<1x128x128xbf16>
    %107 = vector.shape_cast %106 : vector<1x128x128xbf16> to vector<128x128xbf16>
    %cst_91 = arith.constant dense<0.000000e+00> : vector<16x128xf32>
    %108 = tpu.matmul %105, %107, %cst_91 {dimension_numbers = #tpu.dot_dimension_numbers<[1], [0], [0], [1], [0, 0, 1, 1], [], []>} : vector<16x128xbf16>, vector<128x128xbf16>, vector<16x128xf32> -> vector<16x128xf32>
    %109 = arith.addf %104, %108 : vector<16x128xf32>
    %c1_92 = arith.constant 1 : index
    %c0_93 = arith.constant 0 : index
    %110 = vector.load %arg8[%c1_92, %c0_93] : memref<20x128xbf16, #tpu.memory_space<vmem>>, vector<16x128xbf16>
    %c11 = arith.constant 11 : index
    %c0_94 = arith.constant 0 : index
    %c0_95 = arith.constant 0 : index
    %111 = vector.load %arg3[%c11, %c0_94, %c0_95] : memref<15x128x128xbf16, #tpu.memory_space<vmem>>, vector<1x128x128xbf16>
    %112 = vector.shape_cast %111 : vector<1x128x128xbf16> to vector<128x128xbf16>
    %cst_96 = arith.constant dense<0.000000e+00> : vector<16x128xf32>
    %113 = tpu.matmul %110, %112, %cst_96 {dimension_numbers = #tpu.dot_dimension_numbers<[1], [0], [0], [1], [0, 0, 1, 1], [], []>} : vector<16x128xbf16>, vector<128x128xbf16>, vector<16x128xf32> -> vector<16x128xf32>
    %114 = arith.addf %109, %113 : vector<16x128xf32>
    %c2_97 = arith.constant 2 : index
    %c0_98 = arith.constant 0 : index
    %115 = vector.load %arg8[%c2_97, %c0_98] : memref<20x128xbf16, #tpu.memory_space<vmem>>, vector<16x128xbf16>
    %c12 = arith.constant 12 : index
    %c0_99 = arith.constant 0 : index
    %c0_100 = arith.constant 0 : index
    %116 = vector.load %arg3[%c12, %c0_99, %c0_100] : memref<15x128x128xbf16, #tpu.memory_space<vmem>>, vector<1x128x128xbf16>
    %117 = vector.shape_cast %116 : vector<1x128x128xbf16> to vector<128x128xbf16>
    %cst_101 = arith.constant dense<0.000000e+00> : vector<16x128xf32>
    %118 = tpu.matmul %115, %117, %cst_101 {dimension_numbers = #tpu.dot_dimension_numbers<[1], [0], [0], [1], [0, 0, 1, 1], [], []>} : vector<16x128xbf16>, vector<128x128xbf16>, vector<16x128xf32> -> vector<16x128xf32>
    %119 = arith.addf %114, %118 : vector<16x128xf32>
    %c3_102 = arith.constant 3 : index
    %c0_103 = arith.constant 0 : index
    %120 = vector.load %arg8[%c3_102, %c0_103] : memref<20x128xbf16, #tpu.memory_space<vmem>>, vector<16x128xbf16>
    %c13 = arith.constant 13 : index
    %c0_104 = arith.constant 0 : index
    %c0_105 = arith.constant 0 : index
    %121 = vector.load %arg3[%c13, %c0_104, %c0_105] : memref<15x128x128xbf16, #tpu.memory_space<vmem>>, vector<1x128x128xbf16>
    %122 = vector.shape_cast %121 : vector<1x128x128xbf16> to vector<128x128xbf16>
    %cst_106 = arith.constant dense<0.000000e+00> : vector<16x128xf32>
    %123 = tpu.matmul %120, %122, %cst_106 {dimension_numbers = #tpu.dot_dimension_numbers<[1], [0], [0], [1], [0, 0, 1, 1], [], []>} : vector<16x128xbf16>, vector<128x128xbf16>, vector<16x128xf32> -> vector<16x128xf32>
    %124 = arith.addf %119, %123 : vector<16x128xf32>
    %c4_107 = arith.constant 4 : index
    %c0_108 = arith.constant 0 : index
    %125 = vector.load %arg8[%c4_107, %c0_108] : memref<20x128xbf16, #tpu.memory_space<vmem>>, vector<16x128xbf16>
    %c14 = arith.constant 14 : index
    %c0_109 = arith.constant 0 : index
    %c0_110 = arith.constant 0 : index
    %126 = vector.load %arg3[%c14, %c0_109, %c0_110] : memref<15x128x128xbf16, #tpu.memory_space<vmem>>, vector<1x128x128xbf16>
    %127 = vector.shape_cast %126 : vector<1x128x128xbf16> to vector<128x128xbf16>
    %cst_111 = arith.constant dense<0.000000e+00> : vector<16x128xf32>
    %128 = tpu.matmul %125, %127, %cst_111 {dimension_numbers = #tpu.dot_dimension_numbers<[1], [0], [0], [1], [0, 0, 1, 1], [], []>} : vector<16x128xbf16>, vector<128x128xbf16>, vector<16x128xf32> -> vector<16x128xf32>
    %129 = arith.addf %124, %128 : vector<16x128xf32>
    %c2_112 = arith.constant 2 : index
    %c0_113 = arith.constant 0 : index
    %c0_114 = arith.constant 0 : index
    %130 = vector.load %arg4[%c2_112, %c0_113, %c0_114] : memref<3x1x128xf32, #tpu.memory_space<vmem>>, vector<1x1x128xf32>
    %131 = vector.shape_cast %130 : vector<1x1x128xf32> to vector<1x128xf32>
    %132 = vector.broadcast %131 : vector<1x128xf32> to vector<16x128xf32>
    %133 = arith.addf %129, %132 : vector<16x128xf32>
    %134 = arith.addf %133, %22 : vector<16x128xf32>
    %cst_115 = arith.constant 0.000000e+00 : f32
    %cst_116 = arith.constant 2.000000e+01 : f32
    %135 = vector.broadcast %cst_115 : f32 to vector<16x128xf32>
    %136 = arith.maximumf %135, %134 : vector<16x128xf32>
    %137 = vector.broadcast %cst_116 : f32 to vector<16x128xf32>
    %138 = arith.minimumf %137, %136 : vector<16x128xf32>
    %c0_117 = arith.constant 0 : index
    %c0_118 = arith.constant 0 : index
    %c0_119 = arith.constant 0 : index
    %139 = vector.load %arg7[%c0_117, %c0_118, %c0_119] : memref<1x16x128xf32, #tpu.memory_space<vmem>>, vector<1x16x128xf32>
    %140 = vector.shape_cast %139 : vector<1x16x128xf32> to vector<16x128xf32>
    %141 = vector.shape_cast %138 : vector<16x128xf32> to vector<1x16x128xf32>
    tpu.vector_store %arg7[%c0_117, %c0_118, %c0_119], %141 {strides = array<i32>} : memref<1x16x128xf32, #tpu.memory_space<vmem>>, vector<1x16x128xf32>,
    return
  }
  func.func @transform_0(%arg0: i32, %arg1: memref<2xi32, #tpu.memory_space<smem>>) -> (i32, i32, i32) {
    %c0_i32 = arith.constant 0 : i32
    %c0_i32_0 = arith.constant 0 : i32
    %c0_i32_1 = arith.constant 0 : i32
    return %arg0, %c0_i32, %c0_i32_0 : i32, i32, i32
  }
  func.func @transform_1(%arg0: i32, %arg1: memref<2xi32, #tpu.memory_space<smem>>) -> (i32, i32, i32) {
    %c0_i32 = arith.constant 0 : i32
    %c0_i32_0 = arith.constant 0 : i32
    %c0_i32_1 = arith.constant 0 : i32
    %c0_i32_2 = arith.constant 0 : i32
    return %c0_i32, %c0_i32_0, %c0_i32_1 : i32, i32, i32
  }
  func.func @transform_2(%arg0: i32, %arg1: memref<2xi32, #tpu.memory_space<smem>>) -> (i32, i32, i32) {
    %c0_i32 = arith.constant 0 : i32
    %c0_i32_0 = arith.constant 0 : i32
    %c0_i32_1 = arith.constant 0 : i32
    %c0_i32_2 = arith.constant 0 : i32
    return %c0_i32, %c0_i32_0, %c0_i32_1 : i32, i32, i32
  }
  func.func @transform_3(%arg0: i32, %arg1: memref<2xi32, #tpu.memory_space<smem>>) -> (i32, i32, i32) {
    %c0_i32 = arith.constant 0 : i32
    %c0_i32_0 = arith.constant 0 : i32
    %c0_i32_1 = arith.constant 0 : i32
    %c0_i32_2 = arith.constant 0 : i32
    return %c0_i32, %c0_i32_0, %c0_i32_1 : i32, i32, i32
  }
  func.func @transform_4(%arg0: i32, %arg1: memref<2xi32, #tpu.memory_space<smem>>) -> (i32, i32) {
    %c0_i32 = arith.constant 0 : i32
    %c0_i32_0 = arith.constant 0 : i32
    %c0_i32_1 = arith.constant 0 : i32
    return %c0_i32, %c0_i32_0 : i32, i32
  }
  func.func @transform_5(%arg0: i32, %arg1: memref<2xi32, #tpu.memory_space<smem>>) -> (i32, i32, i32) {
    %c0_i32 = arith.constant 0 : i32
    %c0_i32_0 = arith.constant 0 : i32
    %c0_i32_1 = arith.constant 0 : i32
    return %arg0, %c0_i32, %c0_i32_0 : i32, i32, i32
  }
}

</mosaic_0001>

<llo_original>
// kernel: tpu_custom_call.1
$region0: #{tpu_custom_call.1}
  #allocation0 [shape = 'u32[]', space=smem, size = 0x4, offset = 0x4, fixed_abs, tag = 'smem constant byte address 0x4 - core index']
  #allocation1 [shape = 'u32[144,128]{1,0:T(1,128)}', space=vmem, size = 0x12000, scoped, tag = 'internal scratch']
  #allocation2 [shape = 'bf16[20,128]{1,0:T(8,128)(2,1)}', space=vmem, size = 0x1800, scoped, tag = 'scratch operand']
  #allocation3 [shape = 'bf16[20,128]{1,0:T(8,128)(2,1)}', space=vmem, size = 0x1800, scoped, tag = 'scratch operand']
  #allocation4 [shape = 's32[1]{0}', space=sflag, size = 0x4, scoped, tag = 'scoped memory for tpu_custom_call.1']
  #allocation5 [shape = 'u8[512]{0}', space=smem, size = 0x200, scoped, tag = 'prefetched SMEM operand 0']
  %s0 = inlined_call_operand.hbm [shape: s32[2], index: 0, kind: input, shape index: {}]
  %s1 = inlined_call_operand.hbm [shape: bf16[2,16,128], index: 1, kind: input, shape index: {}]
  %s2 = inlined_call_operand.hbm [shape: bf16[15,128,128], index: 2, kind: input, shape index: {}]
  %s3 = inlined_call_operand.vmem [shape: f32[3,1,128], index: 3, kind: input, shape index: {}]
  %s4 = inlined_call_operand.hbm [shape: bf16[1,128,128], index: 4, kind: input, shape index: {}]
  %s5 = inlined_call_operand.vmem [shape: f32[1,128], index: 5, kind: input, shape index: {}]
  %s6 = inlined_call_operand.hbm [shape: f32[2,16,128], index: 6, kind: output, shape index: {}]
  %s7 = sld [smem:[#allocation0]]
  $region65: #{tpu_custom_call.1} parent=0
    _
  %s9 = ssub.s32 1, %s7
  %s10 = scalar_select 0, %s9, %s7
  %12 = dma.hbm_to_smem %s0, 16, [#allocation5], [#allocation4]
  %13 = dma.done [#allocation4], 16
  %14 = sfence
  $region1: #{tpu_custom_call.1} parent=0
    #allocation6 [shape = 'u8[8192]{0}', space=vmem, size = 0x2000, scoped, tag = 'input window, operand 1']
    #allocation7 [shape = 's32[2]{0}', space=sflag, size = 0x8, scoped, tag = 'scoped memory for tpu_custom_call.1']
    #allocation8 [shape = 's32[2]{0}', space=sflag, size = 0x8, scoped, tag = 'scoped memory for tpu_custom_call.1']
    #allocation9 [shape = 'u8[491520]{0}', space=vmem, size = 0x78000, scoped, tag = 'input window, operand 2, single buffered']
    #allocation10 [shape = 's32[1]{0}', space=sflag, size = 0x4, scoped, tag = 'scoped memory for tpu_custom_call.1']
    #allocation11 [shape = 'u8[32768]{0}', space=vmem, size = 0x8000, scoped, tag = 'input window, operand 4, single buffered']
    #allocation12 [shape = 'u8[16384]{0}', space=vmem, size = 0x4000, scoped, tag = 'output window, operand 0']
    %15 = vsyncpa [#allocation7], 0
    %s16 = scalar_lea.sflag [#allocation7], 1
    %17 = vsyncpa %s16, 0
    %18 = vsyncpa [#allocation10], 0
    %19 = vsyncpa [#allocation8], 0
    %s20 = scalar_lea.sflag [#allocation8], 1
    %21 = vsyncpa %s20, 0
    loop: start=0, step=1, limit=4
    $region2: #{tpu_custom_call.1} parent=1 // loop_pre_header
      _
    $region3: #{tpu_custom_call.1} parent=1 // loop_header
      %s23 = sphi 0, %s27
      %p24 = scmp.ge.s32.totalorder %s23, 4
      %s33 = sphi 0, %s35
      %s36 = sphi 0, %s33
      %s37 = sphi 0, %s36
      %s53 = sphi 0, %s37
      %s57 = sphi 0, %s57
      %s59 = sphi 0, %s57
      %s60 = sphi 0, %s59
      %s74 = sphi 0, %s60
      %s78 = sphi 0, %s78
      %s80 = sphi 0, %s78
      %s81 = sphi 0, %s80
      %s95 = sphi 0, %s81
      %s99 = sphi 0, %s99
      %s101 = sphi 0, %s99
      %s102 = sphi 0, %s101
      %s116 = sphi 0, %s102
      %s120 = sphi 0, %s120
      %s122 = sphi 0, %s120
      %s123 = sphi 0, %s122
      %s137 = sphi 0, %s123
      %s143 = sphi 0, %s145
      %s146 = sphi 0, %s143
      %s147 = sphi 0, %s146
      %s163 = sphi 0, %s147
    $region4: #{tpu_custom_call.1} parent=1 // loop_header_branch
      %26 = sbr.rel (%p24) target = $region8
    $region5: #{tpu_custom_call.1} parent=1 // loop_body
      %s28 = ssub.s32 %s23, 1
      %s29 = ssub.s32 %s23, 2
      %s30 = sadd.s32 %s23, 1
      %s31 = ssub.s32 %s23, %s30
      %p32 = scmp.eq.s32.totalorder %s31, 0
      %s34 = sadd.s32 %s33, 1
      %s35 = scalar_select %p32, %s33, %s34
      %p38 = pneg %p32
      %p39 = scmp.eq.s32.totalorder %s23, 1
      %p40 = por %p38, %p39
      %p41 = scmp.ne.s32.totalorder %s33, %s36
      %p42 = scmp.eq.s32.totalorder %s23, 0
      %p43 = por %p41, %p42
      %p44 = scmp.ne.s32.totalorder %s33, %s36
      %p45 = scmp.eq.s32.totalorder %s28, 1
      %p46 = por %p44, %p45
      %p47 = scmp.ne.s32.totalorder %s36, %s37
      %p48 = scmp.eq.s32.totalorder %s28, 0
      %p49 = por %p47, %p48
      %p50 = scmp.ne.s32.totalorder %s36, %s37
      %p51 = scmp.eq.s32.totalorder %s29, 1
      %p52 = por %p50, %p51
      %p54 = scmp.ne.s32.totalorder %s37, %s53
      %p55 = scmp.eq.s32.totalorder %s29, 0
      %p56 = por %p54, %p55
      %s58 = sadd.s32 %s57, 1
      %p61 = scmp.eq.s32.totalorder %s23, 1
      %p62 = scmp.ne.s32.totalorder %s57, %s59
      %p63 = scmp.eq.s32.totalorder %s23, 0
      %p64 = por %p62, %p63
      %p65 = scmp.ne.s32.totalorder %s57, %s59
      %p66 = scmp.eq.s32.totalorder %s28, 1
      %p67 = por %p65, %p66
      %p68 = scmp.ne.s32.totalorder %s59, %s60
      %p69 = scmp.eq.s32.totalorder %s28, 0
      %p70 = por %p68, %p69
      %p71 = scmp.ne.s32.totalorder %s59, %s60
      %p72 = scmp.eq.s32.totalorder %s29, 1
      %p73 = por %p71, %p72
      %p75 = scmp.ne.s32.totalorder %s60, %s74
      %p76 = scmp.eq.s32.totalorder %s29, 0
      %p77 = por %p75, %p76
      %s79 = sadd.s32 %s78, 1
      %p82 = scmp.eq.s32.totalorder %s23, 1
      %p83 = scmp.ne.s32.totalorder %s78, %s80
      %p84 = scmp.eq.s32.totalorder %s23, 0
      %p85 = por %p83, %p84
      %p86 = scmp.ne.s32.totalorder %s78, %s80
      %p87 = scmp.eq.s32.totalorder %s28, 1
      %p88 = por %p86, %p87
      %p89 = scmp.ne.s32.totalorder %s80, %s81
      %p90 = scmp.eq.s32.totalorder %s28, 0
      %p91 = por %p89, %p90
      %p92 = scmp.ne.s32.totalorder %s80, %s81
      %p93 = scmp.eq.s32.totalorder %s29, 1
      %p94 = por %p92, %p93
      %p96 = scmp.ne.s32.totalorder %s81, %s95
      %p97 = scmp.eq.s32.totalorder %s29, 0
      %p98 = por %p96, %p97
      %s100 = sadd.s32 %s99, 1
      %p103 = scmp.eq.s32.totalorder %s23, 1
      %p104 = scmp.ne.s32.totalorder %s99, %s101
      %p105 = scmp.eq.s32.totalorder %s23, 0
      %p106 = por %p104, %p105
      %p107 = scmp.ne.s32.totalorder %s99, %s101
      %p108 = scmp.eq.s32.totalorder %s28, 1
      %p109 = por %p107, %p108
      %p110 = scmp.ne.s32.totalorder %s101, %s102
      %p111 = scmp.eq.s32.totalorder %s28, 0
      %p112 = por %p110, %p111
      %p113 = scmp.ne.s32.totalorder %s101, %s102
      %p114 = scmp.eq.s32.totalorder %s29, 1
      %p115 = por %p113, %p114
      %p117 = scmp.ne.s32.totalorder %s102, %s116
      %p118 = scmp.eq.s32.totalorder %s29, 0
      %p119 = por %p117, %p118
      %s121 = sadd.s32 %s120, 1
      %p124 = scmp.eq.s32.totalorder %s23, 1
      %p125 = scmp.ne.s32.totalorder %s120, %s122
      %p126 = scmp.eq.s32.totalorder %s23, 0
      %p127 = por %p125, %p126
      %p128 = scmp.ne.s32.totalorder %s120, %s122
      %p129 = scmp.eq.s32.totalorder %s28, 1
      %p130 = por %p128, %p129
      %p131 = scmp.ne.s32.totalorder %s122, %s123
      %p132 = scmp.eq.s32.totalorder %s28, 0
      %p133 = por %p131, %p132
      %p134 = scmp.ne.s32.totalorder %s122, %s123
      %p135 = scmp.eq.s32.totalorder %s29, 1
      %p136 = por %p134, %p135
      %p138 = scmp.ne.s32.totalorder %s123, %s137
      %p139 = scmp.eq.s32.totalorder %s29, 0
      %p140 = por %p138, %p139
      %s141 = ssub.s32 %s23, %s30
      %p142 = scmp.eq.s32.totalorder %s141, 0
      %s144 = sadd.s32 %s143, 1
      %s145 = scalar_select %p142, %s143, %s144
      %p148 = pneg %p142
      %p149 = scmp.eq.s32.totalorder %s23, 1
      %p150 = por %p148, %p149
      %p151 = scmp.ne.s32.totalorder %s143, %s146
      %p152 = scmp.eq.s32.totalorder %s23, 0
      %p153 = por %p151, %p152
      %p154 = scmp.ne.s32.totalorder %s143, %s146
      %p155 = scmp.eq.s32.totalorder %s28, 1
      %p156 = por %p154, %p155
      %p157 = scmp.ne.s32.totalorder %s146, %s147
      %p158 = scmp.eq.s32.totalorder %s28, 0
      %p159 = por %p157, %p158
      %p160 = scmp.ne.s32.totalorder %s146, %s147
      %p161 = scmp.eq.s32.totalorder %s29, 1
      %p162 = por %p160, %p161
      %p164 = scmp.ne.s32.totalorder %s147, %s163
      %p165 = scmp.eq.s32.totalorder %s29, 0
      %p166 = por %p164, %p165
      %p167 = scmp.le.s32.totalorder 1, %s23
      %p168 = scmp.lt.s32.totalorder %s23, 3
      %p169 = pnand %p167, %p168
      %p170 = pneg %p169
      // Predicated region
      $region9: #{tpu_custom_call.1} parent=5 // pred_check
        _
      $region10: #{tpu_custom_call.1} parent=5 // pred_check_branch
        %172 = sbr.rel (%p169) target = $region12
      $region11: #{tpu_custom_call.1} parent=5 // pred_region
        %s173 = ssub.s32 %s23, 1
        // Predicated region
        $region13: #{tpu_custom_call.1} parent=11 // pred_check
          %p174 = pneg %p70
        $region14: #{tpu_custom_call.1} parent=11 // pred_check_branch
          %176 = sbr.rel (%p174) target = $region16
        $region15: #{tpu_custom_call.1} parent=11 // pred_region
          %s178 = ssub.s32 15360, 15360
          %179 = vsyncadd [#allocation10], %s178
          %s180 = sshll.u32 [#allocation9], 4
          %s181 = int_to_ptr.vmem [resolvable:$true] %s180
          %186 = dma.hbm_to_vmem [thread:$0]  %s2, 15360, %s181, [#allocation10], 64, 64, 4
        $region16: #{tpu_custom_call.1} parent=11 // pred_fallthru
          _
        // Predicated region
        $region17: #{tpu_custom_call.1} parent=11 // pred_check
          %p187 = pneg %p91
        $region18: #{tpu_custom_call.1} parent=11 // pred_check_branch
          %189 = sbr.rel (%p187) target = $region20
        $region19: #{tpu_custom_call.1} parent=11 // pred_region
          _
        $region20: #{tpu_custom_call.1} parent=11 // pred_fallthru
          _
        // Predicated region
        $region21: #{tpu_custom_call.1} parent=11 // pred_check
          %p190 = pneg %p112
        $region22: #{tpu_custom_call.1} parent=11 // pred_check_branch
          %192 = sbr.rel (%p190) target = $region24
        $region23: #{tpu_custom_call.1} parent=11 // pred_region
          %s194 = ssub.s32 1024, 1024
          %195 = vsyncadd [#allocation10], %s194
          %s196 = sshll.u32 [#allocation11], 4
          %s197 = int_to_ptr.vmem [resolvable:$true] %s196
          %202 = dma.hbm_to_vmem [thread:$0]  %s4, 1024, %s197, [#allocation10], 64, 64, 4
        $region24: #{tpu_custom_call.1} parent=11 // pred_fallthru
          _
        // Predicated region
        $region25: #{tpu_custom_call.1} parent=11 // pred_check
          %p203 = pneg %p133
        $region26: #{tpu_custom_call.1} parent=11 // pred_check_branch
          %205 = sbr.rel (%p203) target = $region28
        $region27: #{tpu_custom_call.1} parent=11 // pred_region
          _
        $region28: #{tpu_custom_call.1} parent=11 // pred_fallthru
          _
      $region12: #{tpu_custom_call.1} parent=5 // pred_fallthru
        _
      %p206 = scmp.lt.s32.totalorder %s23, 2
      // Predicated region
      $region29: #{tpu_custom_call.1} parent=5 // pred_check
        %p207 = pneg %p206
      $region30: #{tpu_custom_call.1} parent=5 // pred_check_branch
        %209 = sbr.rel (%p207) target = $region32
      $region31: #{tpu_custom_call.1} parent=5 // pred_region
        // Predicated region
        $region33: #{tpu_custom_call.1} parent=31 // pred_check
          %p210 = pneg %p43
        $region34: #{tpu_custom_call.1} parent=31 // pred_check_branch
          %212 = sbr.rel (%p210) target = $region36
        $region35: #{tpu_custom_call.1} parent=31 // pred_region
          %s213 = sand.u32 %s33, 1
          %s214 = scalar_lea.sflag [#allocation7], %s213
          %s215 = sand.u32 %s33, 1
          %s216 = smul.addr %s215, 8
          %s217 = scalar_lea.vmem [#allocation6], %s216
          %s219 = ssub.s32 128, 128
          %220 = vsyncadd %s214, %s219
          %s221 = smul.addr %s23, 2
          %s222 = smul.addr %s221, 64
          %s223 = scalar_lea.hbm %s1, %s222
          %s224 = sshll.u32 %s217, 4
          %s225 = int_to_ptr.vmem [resolvable:$true] %s224
          %230 = dma.hbm_to_vmem [thread:$0]  %s223, 128, %s225, %s214, 64, 64, 4
        $region36: #{tpu_custom_call.1} parent=31 // pred_fallthru
          _
      $region32: #{tpu_custom_call.1} parent=5 // pred_fallthru
        _
      %p231 = scmp.le.s32.totalorder 1, %s23
      %p232 = scmp.lt.s32.totalorder %s23, 3
      %p233 = pnand %p231, %p232
      %p234 = pneg %p233
      // Predicated region
      $region37: #{tpu_custom_call.1} parent=5 // pred_check
        _
      $region38: #{tpu_custom_call.1} parent=5 // pred_check_branch
        %236 = sbr.rel (%p233) target = $region40
      $region39: #{tpu_custom_call.1} parent=5 // pred_region
        %s237 = ssub.s32 %s23, 1
        %s238 = sand.u32 %s36, 1
        %s239 = scalar_lea.sflag [#allocation7], %s238
        %s240 = sand.u32 %s36, 1
        %s241 = smul.addr %s240, 8
        %s242 = scalar_lea.vmem [#allocation6], %s241
        // Predicated region
        $region41: #{tpu_custom_call.1} parent=39 // pred_check
          %p243 = pneg %p49
        $region42: #{tpu_custom_call.1} parent=39 // pred_check_branch
          %245 = sbr.rel (%p243) target = $region44
        $region43: #{tpu_custom_call.1} parent=39 // pred_region
          %246 = dma.done %s239, 128
        $region44: #{tpu_custom_call.1} parent=39 // pred_fallthru
          _
        // Predicated region
        $region45: #{tpu_custom_call.1} parent=39 // pred_check
          %p247 = pneg %p70
        $region46: #{tpu_custom_call.1} parent=39 // pred_check_branch
          %249 = sbr.rel (%p247) target = $region48
        $region47: #{tpu_custom_call.1} parent=39 // pred_region
          %250 = dma.done [#allocation10], 15360
        $region48: #{tpu_custom_call.1} parent=39 // pred_fallthru
          _
        // Predicated region
        $region49: #{tpu_custom_call.1} parent=39 // pred_check
          %p251 = pneg %p112
        $region50: #{tpu_custom_call.1} parent=39 // pred_check_branch
          %253 = sbr.rel (%p251) target = $region52
        $region51: #{tpu_custom_call.1} parent=39 // pred_region
          %254 = dma.done [#allocation10], 1024
        $region52: #{tpu_custom_call.1} parent=39 // pred_fallthru
          _
        %s255 = sand.u32 %s36, 1
        %s256 = scalar_lea.sflag [#allocation7], %s255
        %s257 = sand.u32 %s36, 1
        %s258 = smul.addr %s257, 8
        %s259 = scalar_lea.vmem [#allocation6], %s258
        %p260 = pneg %p49
        %p261 = pneg %p46
        %p262 = pneg %p70
        %p263 = pneg %p67
        %p264 = pneg %p91
        %p265 = pneg %p88
        %p266 = pneg %p112
        %p267 = pneg %p109
        %p268 = pneg %p133
        %p269 = pneg %p130
        %p270 = pneg %p159
        %p271 = pneg %p156
        %s272 = sand.u32 %s146, 1
        %s273 = scalar_lea.sflag [#allocation8], %s272
        %s274 = sand.u32 %s146, 1
        %s275 = smul.addr %s274, 16
        %s276 = scalar_lea.vmem [#allocation12], %s275
        %s278 = sld [smem:[#allocation5 + %s28]]
        %279 = vst [vmem:[#allocation2] sm:$0x1] 0
        %280 = vst [vmem:[#allocation2 + $0x8] sm:$0x2] 0
        %281 = vst [vmem:[#allocation3] sm:$0x1] 0
        %282 = vst [vmem:[#allocation3 + $0x8] sm:$0x2] 0
        %v283 = vlaneseq
        %v284 = vshrl.u32 %v283, 7
        %v285 = vadd.s32 %v284, 8
        %v286 = vstv %s278
        %vm287 = vcmp.lt.s32.totalorder %v284, %v286
        %vm288 = vcmp.lt.s32.totalorder %v285, %v286
        %v289 = vld [vmem:[%s242] sm:$0xf]
        %v290 = vld [vmem:[%s242 + $0x4] sm:$0xf]
        %v291 = vsel %vm287, 1, 0
        %v292 = vsel %vm288, 1, 0
        %vm293 = vcmp.eq.s32.totalorder %v291, 1
        %vm294 = vcmp.eq.s32.totalorder %v292, 1
        %vm295 = vmpackc.low %vm293, %vm293
        %vm296 = vmpackc.low %vm294, %vm294
        %v297 = vsel %vm295, %v289, 0
        %v298 = vsel %vm296, %v290, 0
        %v299 = vld [vmem:[#allocation11] sm:$0xf]
        %v300 = vld [vmem:[#allocation11 + $0x4] sm:$0xf]
        %v301 = vld [vmem:[#allocation11 + $0x8] sm:$0xf]
        %v302 = vld [vmem:[#allocation11 + $0xc] sm:$0xf]
        %v303 = vld [vmem:[#allocation11 + $0x10] sm:$0xf]
        %v304 = vld [vmem:[#allocation11 + $0x14] sm:$0xf]
        %v305 = vld [vmem:[#allocation11 + $0x18] sm:$0xf]
        %v306 = vld [vmem:[#allocation11 + $0x1c] sm:$0xf]
        %v307 = vld [vmem:[#allocation11 + $0x20] sm:$0xf]
        %v308 = vld [vmem:[#allocation11 + $0x24] sm:$0xf]
        %v309 = vld [vmem:[#allocation11 + $0x28] sm:$0xf]
        %v310 = vld [vmem:[#allocation11 + $0x2c] sm:$0xf]
        %v311 = vld [vmem:[#allocation11 + $0x30] sm:$0xf]
        %v312 = vld [vmem:[#allocation11 + $0x34] sm:$0xf]
        %v313 = vld [vmem:[#allocation11 + $0x38] sm:$0xf]
        %v314 = vld [vmem:[#allocation11 + $0x3c] sm:$0xf]
        %v315 = vld [vmem:[%s5] sm:$0x1]
        %v317 = vlaneseq
        %v318 = vshrl.u32 %v317, 7
        %v319 = vsub.s32 0, %v318
        %v320 = vrot.slane %v315, %v319
        %v324 = vunpack.c.l.b16 %v297
        %v325 = vunpack.c.l.b16 %v298
        %v326 = vpack.c.b16 %v325, %v324
        %v344 = vunpack.c.l.b16 %v299
        %v345 = vunpack.c.l.b16 %v300
        %v346 = vunpack.c.l.b16 %v301
        %v347 = vunpack.c.l.b16 %v302
        %v348 = vunpack.c.l.b16 %v303
        %v349 = vunpack.c.l.b16 %v304
        %v350 = vunpack.c.l.b16 %v305
        %v351 = vunpack.c.l.b16 %v306
        %v352 = vunpack.c.l.b16 %v307
        %v353 = vunpack.c.l.b16 %v308
        %v354 = vunpack.c.l.b16 %v309
        %v355 = vunpack.c.l.b16 %v310
        %v356 = vunpack.c.l.b16 %v311
        %v357 = vunpack.c.l.b16 %v312
        %v358 = vunpack.c.l.b16 %v313
        %v359 = vunpack.c.l.b16 %v314
        %v360 = vpack.c.b16 %v345, %v344
        %v361 = vpack.c.b16 %v347, %v346
        %v362 = vpack.c.b16 %v349, %v348
        %v363 = vpack.c.b16 %v351, %v350
        %v364 = vpack.c.b16 %v353, %v352
        %v365 = vpack.c.b16 %v355, %v354
        %v366 = vpack.c.b16 %v357, %v356
        %v367 = vpack.c.b16 %v359, %v358
        %376 = vmatprep.subr.bf16.mxu0 0
        %377 = vmatpush1.bf16.msra.mxu0 %v367
        %378 = vmatprep.subr.bf16.mxu0 0
        %379 = vmatpush1.bf16.msra.mxu0 %v366
        %380 = vmatprep.subr.bf16.mxu0 0
        %381 = vmatpush1.bf16.msra.mxu0 %v365
        %382 = vmatprep.subr.bf16.mxu0 0
        %383 = vmatpush1.bf16.msra.mxu0 %v364
        %384 = vmatprep.subr.bf16.mxu0 0
        %385 = vmatpush1.bf16.msra.mxu0 %v363
        %386 = vmatprep.subr.bf16.mxu0 0
        %387 = vmatpush1.bf16.msra.mxu0 %v362
        %388 = vmatprep.subr.bf16.mxu0 0
        %389 = vmatpush1.bf16.msra.mxu0 %v361
        %390 = vmatprep.subr.bf16.mxu0 0
        %391 = vmatpush1.bf16.msra.mxu0 %v360
        %392 = vmatprep.subr.bf16.mxu0 0
        %393 = vmatpush2.bf16.msra.mxu0 0
        %394 = vmatprep.subr.bf16.mxu0 0
        %395 = vmatpush2.bf16.msra.mxu0 0
        %396 = vmatprep.subr.bf16.mxu0 0
        %397 = vmatpush2.bf16.msra.mxu0 0
        %398 = vmatprep.subr.bf16.mxu0 0
        %399 = vmatpush2.bf16.msra.mxu0 0
        %400 = vmatprep.subr.bf16.mxu0 0
        %401 = vmatpush2.bf16.msra.mxu0 0
        %402 = vmatprep.subr.bf16.mxu0 0
        %403 = vmatpush2.bf16.msra.mxu0 0
        %404 = vmatprep.subr.bf16.mxu0 0
        %405 = vmatpush2.bf16.msra.mxu0 0
        %406 = vmatprep.subr.bf16.mxu0 0
        %407 = vmatpush2.bf16.msra.mxu0 0
        %408 = vmatprep.mubr.bf16.mxu0 0
        %409 = vmatmul.mubr.bf16.gmra.mxu0 %v326
        %v410 = vpop.f32.mrf.mxu0
        %v411 = vadd.f32 %v320, %v410
        %v412 = vpop.f32.mrf.mxu0
        %v413 = vpop.f32.mrf.mxu0
        %v414 = vadd.f32 %v320, %v413
        %v415 = vpop.f32.mrf.mxu0
        %416 = vdwg.mxu0
        %vm417 = vcmask 1040384
        %vm418 = vcmask 1044484
        %vm419 = vmor %vm417, %vm418
        %v420 = vrot.slane %v297, 7
        %v421 = vrot.slane %v420, 4
        %v422 = vrot.slane %v298, 7
        %v423 = vsel %vm419, %v421, %v422
        %v424 = vrot.slane %v422, 4
        %428 = vst [vmem:[#allocation2] sm:$0xe] %v420
        %429 = vst [vmem:[#allocation2 + $0x4] sm:$0xf] %v423
        %430 = vst [vmem:[#allocation2 + $0x8] sm:$0x1] %v424
        %v431 = vld [vmem:[#allocation2] sm:$0xf]
        %v432 = vld [vmem:[#allocation2 + $0x4] sm:$0xf]
        %v433 = vld [vmem:[#allocation9] sm:$0xf]
        %v434 = vld [vmem:[#allocation9 + $0x4] sm:$0xf]
        %v435 = vld [vmem:[#allocation9 + $0x8] sm:$0xf]
        %v436 = vld [vmem:[#allocation9 + $0xc] sm:$0xf]
        %v437 = vld [vmem:[#allocation9 + $0x10] sm:$0xf]
        %v438 = vld [vmem:[#allocation9 + $0x14] sm:$0xf]
        %v439 = vld [vmem:[#allocation9 + $0x18] sm:$0xf]
        %v440 = vld [vmem:[#allocation9 + $0x1c] sm:$0xf]
        %v441 = vld [vmem:[#allocation9 + $0x20] sm:$0xf]
        %v442 = vld [vmem:[#allocation9 + $0x24] sm:$0xf]
        %v443 = vld [vmem:[#allocation9 + $0x28] sm:$0xf]
        %v444 = vld [vmem:[#allocation9 + $0x2c] sm:$0xf]
        %v445 = vld [vmem:[#allocation9 + $0x30] sm:$0xf]
        %v446 = vld [vmem:[#allocation9 + $0x34] sm:$0xf]
        %v447 = vld [vmem:[#allocation9 + $0x38] sm:$0xf]
        %v448 = vld [vmem:[#allocation9 + $0x3c] sm:$0xf]
        %v449 = vld [vmem:[#allocation2 + $0x8] sm:$0x1]
        %s450 = scalar_lea.vmem [#allocation9], 64
        %v451 = vld [vmem:[%s450] sm:$0xf]
        %v452 = vld [vmem:[%s450 + $0x4] sm:$0xf]
        %v453 = vld [vmem:[%s450 + $0x8] sm:$0xf]
        %v454 = vld [vmem:[%s450 + $0xc] sm:$0xf]
        %v455 = vld [vmem:[%s450 + $0x10] sm:$0xf]
        %v456 = vld [vmem:[%s450 + $0x14] sm:$0xf]
        %v457 = vld [vmem:[%s450 + $0x18] sm:$0xf]
        %v458 = vld [vmem:[%s450 + $0x1c] sm:$0xf]
        %v459 = vld [vmem:[%s450 + $0x20] sm:$0xf]
        %v460 = vld [vmem:[%s450 + $0x24] sm:$0xf]
        %v461 = vld [vmem:[%s450 + $0x28] sm:$0xf]
        %v462 = vld [vmem:[%s450 + $0x2c] sm:$0xf]
        %v463 = vld [vmem:[%s450 + $0x30] sm:$0xf]
        %v464 = vld [vmem:[%s450 + $0x34] sm:$0xf]
        %v465 = vld [vmem:[%s450 + $0x38] sm:$0xf]
        %v466 = vld [vmem:[%s450 + $0x3c] sm:$0xf]
        %v470 = vunpack.c.l.b16 %v431
        %v471 = vunpack.c.l.b16 %v432
        %v472 = vunpack.c.l.b16 %v449
        %v473 = vpack.c.b16 %v471, %v470
        %v474 = vpack.c.b16 %v472, %v472
        %vm475 = vsmask.f32 7424
        %v477 = vshrl.u32 %v473, 16
        %v479 = vshll.u32 %v473, 16
        %v481 = vrot.slane %v479, 1
        %v482 = vor.u32 %v477, %v481
        %v484 = vshll.u32 %v474, 16
        %v486 = vrot.slane %v484, 1
        %v487 = vsel %vm475, %v482, %v486
        %v505 = vunpack.c.l.b16 %v451
        %v506 = vunpack.c.l.b16 %v452
        %v507 = vunpack.c.l.b16 %v453
        %v508 = vunpack.c.l.b16 %v454
        %v509 = vunpack.c.l.b16 %v455
        %v510 = vunpack.c.l.b16 %v456
        %v511 = vunpack.c.l.b16 %v457
        %v512 = vunpack.c.l.b16 %v458
        %v513 = vunpack.c.l.b16 %v459
        %v514 = vunpack.c.l.b16 %v460
        %v515 = vunpack.c.l.b16 %v461
        %v516 = vunpack.c.l.b16 %v462
        %v517 = vunpack.c.l.b16 %v463
        %v518 = vunpack.c.l.b16 %v464
        %v519 = vunpack.c.l.b16 %v465
        %v520 = vunpack.c.l.b16 %v466
        %v521 = vpack.c.b16 %v506, %v505
        %v522 = vpack.c.b16 %v508, %v507
        %v523 = vpack.c.b16 %v510, %v509
        %v524 = vpack.c.b16 %v512, %v511
        %v525 = vpack.c.b16 %v514, %v513
        %v526 = vpack.c.b16 %v516, %v515
        %v527 = vpack.c.b16 %v518, %v517
        %v528 = vpack.c.b16 %v520, %v519
        %537 = vmatprep.subr.bf16.mxu0 0
        %538 = vmatpush1.bf16.msra.mxu0 %v528
        %539 = vmatprep.subr.bf16.mxu0 0
        %540 = vmatpush1.bf16.msra.mxu0 %v527
        %541 = vmatprep.subr.bf16.mxu0 0
        %542 = vmatpush1.bf16.msra.mxu0 %v526
        %543 = vmatprep.subr.bf16.mxu0 0
        %544 = vmatpush1.bf16.msra.mxu0 %v525
        %545 = vmatprep.subr.bf16.mxu0 0
        %546 = vmatpush1.bf16.msra.mxu0 %v524
        %547 = vmatprep.subr.bf16.mxu0 0
        %548 = vmatpush1.bf16.msra.mxu0 %v523
        %549 = vmatprep.subr.bf16.mxu0 0
        %550 = vmatpush1.bf16.msra.mxu0 %v522
        %551 = vmatprep.subr.bf16.mxu0 0
        %552 = vmatpush1.bf16.msra.mxu0 %v521
        %553 = vmatprep.subr.bf16.mxu0 0
        %554 = vmatpush2.bf16.msra.mxu0 0
        %555 = vmatprep.subr.bf16.mxu0 0
        %556 = vmatpush2.bf16.msra.mxu0 0
        %557 = vmatprep.subr.bf16.mxu0 0
        %558 = vmatpush2.bf16.msra.mxu0 0
        %559 = vmatprep.subr.bf16.mxu0 0
        %560 = vmatpush2.bf16.msra.mxu0 0
        %561 = vmatprep.subr.bf16.mxu0 0
        %562 = vmatpush2.bf16.msra.mxu0 0
        %563 = vmatprep.subr.bf16.mxu0 0
        %564 = vmatpush2.bf16.msra.mxu0 0
        %565 = vmatprep.subr.bf16.mxu0 0
        %566 = vmatpush2.bf16.msra.mxu0 0
        %567 = vmatprep.subr.bf16.mxu0 0
        %568 = vmatpush2.bf16.msra.mxu0 0
        %569 = vmatprep.mubr.bf16.mxu0 0
        %570 = vmatmul.mubr.bf16.gmra.mxu0 %v487
        %v571 = vpop.f32.mrf.mxu0
        %v572 = vadd.f32 0.0, %v571
        %v573 = vpop.f32.mrf.mxu0
        %v574 = vpop.f32.mrf.mxu0
        %v575 = vadd.f32 0.0, %v574
        %v576 = vpop.f32.mrf.mxu0
        %577 = vdwg.mxu0
        %v595 = vunpack.c.l.b16 %v433
        %v596 = vunpack.c.l.b16 %v434
        %v597 = vunpack.c.l.b16 %v435
        %v598 = vunpack.c.l.b16 %v436
        %v599 = vunpack.c.l.b16 %v437
        %v600 = vunpack.c.l.b16 %v438
        %v601 = vunpack.c.l.b16 %v439
        %v602 = vunpack.c.l.b16 %v440
        %v603 = vunpack.c.l.b16 %v441
        %v604 = vunpack.c.l.b16 %v442
        %v605 = vunpack.c.l.b16 %v443
        %v606 = vunpack.c.l.b16 %v444
        %v607 = vunpack.c.l.b16 %v445
        %v608 = vunpack.c.l.b16 %v446
        %v609 = vunpack.c.l.b16 %v447
        %v610 = vunpack.c.l.b16 %v448
        %v611 = vpack.c.b16 %v596, %v595
        %v612 = vpack.c.b16 %v598, %v597
        %v613 = vpack.c.b16 %v600, %v599
        %v614 = vpack.c.b16 %v602, %v601
        %v615 = vpack.c.b16 %v604, %v603
        %v616 = vpack.c.b16 %v606, %v605
        %v617 = vpack.c.b16 %v608, %v607
        %v618 = vpack.c.b16 %v610, %v609
        %627 = vmatprep.subr.bf16.mxu0 0
        %628 = vmatpush1.bf16.msra.mxu0 %v618
        %629 = vmatprep.subr.bf16.mxu0 0
        %630 = vmatpush1.bf16.msra.mxu0 %v617
        %631 = vmatprep.subr.bf16.mxu0 0
        %632 = vmatpush1.bf16.msra.mxu0 %v616
        %633 = vmatprep.subr.bf16.mxu0 0
        %634 = vmatpush1.bf16.msra.mxu0 %v615
        %635 = vmatprep.subr.bf16.mxu0 0
        %636 = vmatpush1.bf16.msra.mxu0 %v614
        %637 = vmatprep.subr.bf16.mxu0 0
        %638 = vmatpush1.bf16.msra.mxu0 %v613
        %639 = vmatprep.subr.bf16.mxu0 0
        %640 = vmatpush1.bf16.msra.mxu0 %v612
        %641 = vmatprep.subr.bf16.mxu0 0
        %642 = vmatpush1.bf16.msra.mxu0 %v611
        %643 = vmatprep.subr.bf16.mxu0 0
        %644 = vmatpush2.bf16.msra.mxu0 0
        %645 = vmatprep.subr.bf16.mxu0 0
        %646 = vmatpush2.bf16.msra.mxu0 0
        %647 = vmatprep.subr.bf16.mxu0 0
        %648 = vmatpush2.bf16.msra.mxu0 0
        %649 = vmatprep.subr.bf16.mxu0 0
        %650 = vmatpush2.bf16.msra.mxu0 0
        %651 = vmatprep.subr.bf16.mxu0 0
        %652 = vmatpush2.bf16.msra.mxu0 0
        %653 = vmatprep.subr.bf16.mxu0 0
        %654 = vmatpush2.bf16.msra.mxu0 0
        %655 = vmatprep.subr.bf16.mxu0 0
        %656 = vmatpush2.bf16.msra.mxu0 0
        %657 = vmatprep.subr.bf16.mxu0 0
        %658 = vmatpush2.bf16.msra.mxu0 0
        %659 = vmatprep.mubr.bf16.mxu0 0
        %660 = vmatmul.mubr.bf16.gmra.mxu0 %v473
        %v661 = vpop.f32.mrf.mxu0
        %v662 = vadd.f32 %v572, %v661
        %v663 = vpop.f32.mrf.mxu0
        %v664 = vpop.f32.mrf.mxu0
        %v665 = vadd.f32 %v575, %v664
        %v666 = vpop.f32.mrf.mxu0
        %667 = vdwg.mxu0
        %v668 = vld [vmem:[#allocation2] sm:$0xe]
        %s669 = scalar_lea.vmem [#allocation9], 128
        %v670 = vld [vmem:[%s669] sm:$0xf]
        %v671 = vld [vmem:[%s669 + $0x4] sm:$0xf]
        %v672 = vld [vmem:[%s669 + $0x8] sm:$0xf]
        %v673 = vld [vmem:[%s669 + $0xc] sm:$0xf]
        %v674 = vld [vmem:[%s669 + $0x10] sm:$0xf]
        %v675 = vld [vmem:[%s669 + $0x14] sm:$0xf]
        %v676 = vld [vmem:[%s669 + $0x18] sm:$0xf]
        %v677 = vld [vmem:[%s669 + $0x1c] sm:$0xf]
        %v678 = vld [vmem:[%s669 + $0x20] sm:$0xf]
        %v679 = vld [vmem:[%s669 + $0x24] sm:$0xf]
        %v680 = vld [vmem:[%s669 + $0x28] sm:$0xf]
        %v681 = vld [vmem:[%s669 + $0x2c] sm:$0xf]
        %v682 = vld [vmem:[%s669 + $0x30] sm:$0xf]
        %v683 = vld [vmem:[%s669 + $0x34] sm:$0xf]
        %v684 = vld [vmem:[%s669 + $0x38] sm:$0xf]
        %v685 = vld [vmem:[%s669 + $0x3c] sm:$0xf]
        %v687 = vunpack.c.l.b16 %v668
        %v688 = vpack.c.b16 %v471, %v687
        %vm689 = vcmask 1046528
        %v690 = vrot.slane %v688, 1
        %v691 = vrot.slane %v474, 1
        %v692 = vsel %vm689, %v690, %v691
        %v710 = vunpack.c.l.b16 %v670
        %v711 = vunpack.c.l.b16 %v671
        %v712 = vunpack.c.l.b16 %v672
        %v713 = vunpack.c.l.b16 %v673
        %v714 = vunpack.c.l.b16 %v674
        %v715 = vunpack.c.l.b16 %v675
        %v716 = vunpack.c.l.b16 %v676
        %v717 = vunpack.c.l.b16 %v677
        %v718 = vunpack.c.l.b16 %v678
        %v719 = vunpack.c.l.b16 %v679
        %v720 = vunpack.c.l.b16 %v680
        %v721 = vunpack.c.l.b16 %v681
        %v722 = vunpack.c.l.b16 %v682
        %v723 = vunpack.c.l.b16 %v683
        %v724 = vunpack.c.l.b16 %v684
        %v725 = vunpack.c.l.b16 %v685
        %v726 = vpack.c.b16 %v711, %v710
        %v727 = vpack.c.b16 %v713, %v712
        %v728 = vpack.c.b16 %v715, %v714
        %v729 = vpack.c.b16 %v717, %v716
        %v730 = vpack.c.b16 %v719, %v718
        %v731 = vpack.c.b16 %v721, %v720
        %v732 = vpack.c.b16 %v723, %v722
        %v733 = vpack.c.b16 %v725, %v724
        %742 = vmatprep.subr.bf16.mxu0 0
        %743 = vmatpush1.bf16.msra.mxu0 %v733
        %744 = vmatprep.subr.bf16.mxu0 0
        %745 = vmatpush1.bf16.msra.mxu0 %v732
        %746 = vmatprep.subr.bf16.mxu0 0
        %747 = vmatpush1.bf16.msra.mxu0 %v731
        %748 = vmatprep.subr.bf16.mxu0 0
        %749 = vmatpush1.bf16.msra.mxu0 %v730
        %750 = vmatprep.subr.bf16.mxu0 0
        %751 = vmatpush1.bf16.msra.mxu0 %v729
        %752 = vmatprep.subr.bf16.mxu0 0
        %753 = vmatpush1.bf16.msra.mxu0 %v728
        %754 = vmatprep.subr.bf16.mxu0 0
        %755 = vmatpush1.bf16.msra.mxu0 %v727
        %756 = vmatprep.subr.bf16.mxu0 0
        %757 = vmatpush1.bf16.msra.mxu0 %v726
        %758 = vmatprep.subr.bf16.mxu0 0
        %759 = vmatpush2.bf16.msra.mxu0 0
        %760 = vmatprep.subr.bf16.mxu0 0
        %761 = vmatpush2.bf16.msra.mxu0 0
        %762 = vmatprep.subr.bf16.mxu0 0
        %763 = vmatpush2.bf16.msra.mxu0 0
        %764 = vmatprep.subr.bf16.mxu0 0
        %765 = vmatpush2.bf16.msra.mxu0 0
        %766 = vmatprep.subr.bf16.mxu0 0
        %767 = vmatpush2.bf16.msra.mxu0 0
        %768 = vmatprep.subr.bf16.mxu0 0
        %769 = vmatpush2.bf16.msra.mxu0 0
        %770 = vmatprep.subr.bf16.mxu0 0
        %771 = vmatpush2.bf16.msra.mxu0 0
        %772 = vmatprep.subr.bf16.mxu0 0
        %773 = vmatpush2.bf16.msra.mxu0 0
        %774 = vmatprep.mubr.bf16.mxu0 0
        %775 = vmatmul.mubr.bf16.gmra.mxu0 %v692
        %v776 = vpop.f32.mrf.mxu0
        %v777 = vadd.f32 0.0, %v776
        %v778 = vpop.f32.mrf.mxu0
        %v779 = vpop.f32.mrf.mxu0
        %v780 = vadd.f32 0.0, %v779
        %v781 = vpop.f32.mrf.mxu0
        %782 = vdwg.mxu0
        %v783 = vadd.f32 %v662, %v777
        %v784 = vadd.f32 %v665, %v780
        %v785 = vld [vmem:[#allocation2 + $0x8] sm:$0x3]
        %s786 = scalar_lea.vmem [#allocation9], 192
        %v787 = vld [vmem:[%s786] sm:$0xf]
        %v788 = vld [vmem:[%s786 + $0x4] sm:$0xf]
        %v789 = vld [vmem:[%s786 + $0x8] sm:$0xf]
        %v790 = vld [vmem:[%s786 + $0xc] sm:$0xf]
        %v791 = vld [vmem:[%s786 + $0x10] sm:$0xf]
        %v792 = vld [vmem:[%s786 + $0x14] sm:$0xf]
        %v793 = vld [vmem:[%s786 + $0x18] sm:$0xf]
        %v794 = vld [vmem:[%s786 + $0x1c] sm:$0xf]
        %v795 = vld [vmem:[%s786 + $0x20] sm:$0xf]
        %v796 = vld [vmem:[%s786 + $0x24] sm:$0xf]
        %v797 = vld [vmem:[%s786 + $0x28] sm:$0xf]
        %v798 = vld [vmem:[%s786 + $0x2c] sm:$0xf]
        %v799 = vld [vmem:[%s786 + $0x30] sm:$0xf]
        %v800 = vld [vmem:[%s786 + $0x34] sm:$0xf]
        %v801 = vld [vmem:[%s786 + $0x38] sm:$0xf]
        %v802 = vld [vmem:[%s786 + $0x3c] sm:$0xf]
        %v804 = vunpack.c.l.b16 %v785
        %v805 = vpack.c.b16 %v804, %v804
        %vm806 = vsmask.f32 6400
        %v808 = vshrl.u32 %v688, 16
        %v810 = vrot.slane %v808, 1
        %v811 = vshll.u32 %v688, 16
        %v813 = vrot.slane %v811, 2
        %v814 = vor.u32 %v810, %v813
        %v816 = vshrl.u32 %v805, 16
        %v818 = vrot.slane %v816, 1
        %v819 = vshll.u32 %v805, 16
        %v821 = vrot.slane %v819, 2
        %v822 = vor.u32 %v818, %v821
        %v823 = vsel %vm806, %v814, %v822
        %v841 = vunpack.c.l.b16 %v787
        %v842 = vunpack.c.l.b16 %v788
        %v843 = vunpack.c.l.b16 %v789
        %v844 = vunpack.c.l.b16 %v790
        %v845 = vunpack.c.l.b16 %v791
        %v846 = vunpack.c.l.b16 %v792
        %v847 = vunpack.c.l.b16 %v793
        %v848 = vunpack.c.l.b16 %v794
        %v849 = vunpack.c.l.b16 %v795
        %v850 = vunpack.c.l.b16 %v796
        %v851 = vunpack.c.l.b16 %v797
        %v852 = vunpack.c.l.b16 %v798
        %v853 = vunpack.c.l.b16 %v799
        %v854 = vunpack.c.l.b16 %v800
        %v855 = vunpack.c.l.b16 %v801
        %v856 = vunpack.c.l.b16 %v802
        %v857 = vpack.c.b16 %v842, %v841
        %v858 = vpack.c.b16 %v844, %v843
        %v859 = vpack.c.b16 %v846, %v845
        %v860 = vpack.c.b16 %v848, %v847
        %v861 = vpack.c.b16 %v850, %v849
        %v862 = vpack.c.b16 %v852, %v851
        %v863 = vpack.c.b16 %v854, %v853
        %v864 = vpack.c.b16 %v856, %v855
        %873 = vmatprep.subr.bf16.mxu0 0
        %874 = vmatpush1.bf16.msra.mxu0 %v864
        %875 = vmatprep.subr.bf16.mxu0 0
        %876 = vmatpush1.bf16.msra.mxu0 %v863
        %877 = vmatprep.subr.bf16.mxu0 0
        %878 = vmatpush1.bf16.msra.mxu0 %v862
        %879 = vmatprep.subr.bf16.mxu0 0
        %880 = vmatpush1.bf16.msra.mxu0 %v861
        %881 = vmatprep.subr.bf16.mxu0 0
        %882 = vmatpush1.bf16.msra.mxu0 %v860
        %883 = vmatprep.subr.bf16.mxu0 0
        %884 = vmatpush1.bf16.msra.mxu0 %v859
        %885 = vmatprep.subr.bf16.mxu0 0
        %886 = vmatpush1.bf16.msra.mxu0 %v858
        %887 = vmatprep.subr.bf16.mxu0 0
        %888 = vmatpush1.bf16.msra.mxu0 %v857
        %889 = vmatprep.subr.bf16.mxu0 0
        %890 = vmatpush2.bf16.msra.mxu0 0
        %891 = vmatprep.subr.bf16.mxu0 0
        %892 = vmatpush2.bf16.msra.mxu0 0
        %893 = vmatprep.subr.bf16.mxu0 0
        %894 = vmatpush2.bf16.msra.mxu0 0
        %895 = vmatprep.subr.bf16.mxu0 0
        %896 = vmatpush2.bf16.msra.mxu0 0
        %897 = vmatprep.subr.bf16.mxu0 0
        %898 = vmatpush2.bf16.msra.mxu0 0
        %899 = vmatprep.subr.bf16.mxu0 0
        %900 = vmatpush2.bf16.msra.mxu0 0
        %901 = vmatprep.subr.bf16.mxu0 0
        %902 = vmatpush2.bf16.msra.mxu0 0
        %903 = vmatprep.subr.bf16.mxu0 0
        %904 = vmatpush2.bf16.msra.mxu0 0
        %905 = vmatprep.mubr.bf16.mxu0 0
        %906 = vmatmul.mubr.bf16.gmra.mxu0 %v823
        %v907 = vpop.f32.mrf.mxu0
        %v908 = vadd.f32 0.0, %v907
        %v909 = vpop.f32.mrf.mxu0
        %v910 = vpop.f32.mrf.mxu0
        %v911 = vadd.f32 0.0, %v910
        %v912 = vpop.f32.mrf.mxu0
        %913 = vdwg.mxu0
        %v914 = vadd.f32 %v783, %v908
        %v915 = vadd.f32 %v784, %v911
        %v916 = vld [vmem:[#allocation2] sm:$0xc]
        %s917 = scalar_lea.vmem [#allocation9], 256
        %v918 = vld [vmem:[%s917] sm:$0xf]
        %v919 = vld [vmem:[%s917 + $0x4] sm:$0xf]
        %v920 = vld [vmem:[%s917 + $0x8] sm:$0xf]
        %v921 = vld [vmem:[%s917 + $0xc] sm:$0xf]
        %v922 = vld [vmem:[%s917 + $0x10] sm:$0xf]
        %v923 = vld [vmem:[%s917 + $0x14] sm:$0xf]
        %v924 = vld [vmem:[%s917 + $0x18] sm:$0xf]
        %v925 = vld [vmem:[%s917 + $0x1c] sm:$0xf]
        %v926 = vld [vmem:[%s917 + $0x20] sm:$0xf]
        %v927 = vld [vmem:[%s917 + $0x24] sm:$0xf]
        %v928 = vld [vmem:[%s917 + $0x28] sm:$0xf]
        %v929 = vld [vmem:[%s917 + $0x2c] sm:$0xf]
        %v930 = vld [vmem:[%s917 + $0x30] sm:$0xf]
        %v931 = vld [vmem:[%s917 + $0x34] sm:$0xf]
        %v932 = vld [vmem:[%s917 + $0x38] sm:$0xf]
        %v933 = vld [vmem:[%s917 + $0x3c] sm:$0xf]
        %v935 = vunpack.c.l.b16 %v916
        %v936 = vpack.c.b16 %v471, %v935
        %vm937 = vcmask 1045504
        %v938 = vrot.slane %v936, 2
        %v939 = vrot.slane %v805, 2
        %v940 = vsel %vm937, %v938, %v939
        %v958 = vunpack.c.l.b16 %v918
        %v959 = vunpack.c.l.b16 %v919
        %v960 = vunpack.c.l.b16 %v920
        %v961 = vunpack.c.l.b16 %v921
        %v962 = vunpack.c.l.b16 %v922
        %v963 = vunpack.c.l.b16 %v923
        %v964 = vunpack.c.l.b16 %v924
        %v965 = vunpack.c.l.b16 %v925
        %v966 = vunpack.c.l.b16 %v926
        %v967 = vunpack.c.l.b16 %v927
        %v968 = vunpack.c.l.b16 %v928
        %v969 = vunpack.c.l.b16 %v929
        %v970 = vunpack.c.l.b16 %v930
        %v971 = vunpack.c.l.b16 %v931
        %v972 = vunpack.c.l.b16 %v932
        %v973 = vunpack.c.l.b16 %v933
        %v974 = vpack.c.b16 %v959, %v958
        %v975 = vpack.c.b16 %v961, %v960
        %v976 = vpack.c.b16 %v963, %v962
        %v977 = vpack.c.b16 %v965, %v964
        %v978 = vpack.c.b16 %v967, %v966
        %v979 = vpack.c.b16 %v969, %v968
        %v980 = vpack.c.b16 %v971, %v970
        %v981 = vpack.c.b16 %v973, %v972
        %990 = vmatprep.subr.bf16.mxu0 0
        %991 = vmatpush1.bf16.msra.mxu0 %v981
        %992 = vmatprep.subr.bf16.mxu0 0
        %993 = vmatpush1.bf16.msra.mxu0 %v980
        %994 = vmatprep.subr.bf16.mxu0 0
        %995 = vmatpush1.bf16.msra.mxu0 %v979
        %996 = vmatprep.subr.bf16.mxu0 0
        %997 = vmatpush1.bf16.msra.mxu0 %v978
        %998 = vmatprep.subr.bf16.mxu0 0
        %999 = vmatpush1.bf16.msra.mxu0 %v977
        %1000 = vmatprep.subr.bf16.mxu0 0
        %1001 = vmatpush1.bf16.msra.mxu0 %v976
        %1002 = vmatprep.subr.bf16.mxu0 0
        %1003 = vmatpush1.bf16.msra.mxu0 %v975
        %1004 = vmatprep.subr.bf16.mxu0 0
        %1005 = vmatpush1.bf16.msra.mxu0 %v974
        %1006 = vmatprep.subr.bf16.mxu0 0
        %1007 = vmatpush2.bf16.msra.mxu0 0
        %1008 = vmatprep.subr.bf16.mxu0 0
        %1009 = vmatpush2.bf16.msra.mxu0 0
        %1010 = vmatprep.subr.bf16.mxu0 0
        %1011 = vmatpush2.bf16.msra.mxu0 0
        %1012 = vmatprep.subr.bf16.mxu0 0
        %1013 = vmatpush2.bf16.msra.mxu0 0
        %1014 = vmatprep.subr.bf16.mxu0 0
        %1015 = vmatpush2.bf16.msra.mxu0 0
        %1016 = vmatprep.subr.bf16.mxu0 0
        %1017 = vmatpush2.bf16.msra.mxu0 0
        %1018 = vmatprep.subr.bf16.mxu0 0
        %1019 = vmatpush2.bf16.msra.mxu0 0
        %1020 = vmatprep.subr.bf16.mxu0 0
        %1021 = vmatpush2.bf16.msra.mxu0 0
        %1022 = vmatprep.mubr.bf16.mxu0 0
        %1023 = vmatmul.mubr.bf16.gmra.mxu0 %v940
        %v1024 = vpop.f32.mrf.mxu0
        %v1025 = vadd.f32 0.0, %v1024
        %v1026 = vpop.f32.mrf.mxu0
        %v1027 = vpop.f32.mrf.mxu0
        %v1028 = vadd.f32 0.0, %v1027
        %v1029 = vpop.f32.mrf.mxu0
        %1030 = vdwg.mxu0
        %v1031 = vadd.f32 %v914, %v1025
        %v1032 = vadd.f32 %v915, %v1028
        %v1033 = vld [vmem:[%s3] sm:$0x1]
        %v1035 = vlaneseq
        %v1036 = vshrl.u32 %v1035, 7
        %v1037 = vsub.s32 0, %v1036
        %v1038 = vrot.slane %v1033, %v1037
        %v1040 = vadd.f32 %v1031, %v1038
        %v1041 = vadd.f32 %v1032, %v1038
        %v1042 = vmax.f32 %v1040, 0.0
        %v1043 = vmax.f32 %v1041, 0.0
        %v1044 = vmin.f32 %v1042, 20.0
        %v1045 = vmin.f32 %v1043, 20.0
        %v1046 = vsel %vm293, %v1044, 0.0
        %v1047 = vsel %vm294, %v1045, 0.0
        %v1048 = vpack.c.bf16 %v1047, %v1046
        %v1050 = vunpack.c.l.b16 %v1048
        %v1051 = vunpack.c.h.b16 %v1048
        %v1052 = vpack.c.b16 %v1050, %v1050
        %v1053 = vpack.c.b16 %v1051, %v1051
        %v1054 = vrot.slane %v1052, 7
        %v1055 = vrot.slane %v1054, 4
        %v1056 = vrot.slane %v1053, 7
        %v1057 = vsel %vm419, %v1055, %v1056
        %v1058 = vrot.slane %v1056, 4
        %1062 = vst [vmem:[#allocation3] sm:$0xe] %v1054
        %1063 = vst [vmem:[#allocation3 + $0x4] sm:$0xf] %v1057
        %1064 = vst [vmem:[#allocation3 + $0x8] sm:$0x1] %v1058
        %v1065 = vld [vmem:[#allocation3] sm:$0xf]
        %v1066 = vld [vmem:[#allocation3 + $0x4] sm:$0xf]
        %s1067 = scalar_lea.vmem [#allocation9], 320
        %v1068 = vld [vmem:[%s1067] sm:$0xf]
        %v1069 = vld [vmem:[%s1067 + $0x4] sm:$0xf]
        %v1070 = vld [vmem:[%s1067 + $0x8] sm:$0xf]
        %v1071 = vld [vmem:[%s1067 + $0xc] sm:$0xf]
        %v1072 = vld [vmem:[%s1067 + $0x10] sm:$0xf]
        %v1073 = vld [vmem:[%s1067 + $0x14] sm:$0xf]
        %v1074 = vld [vmem:[%s1067 + $0x18] sm:$0xf]
        %v1075 = vld [vmem:[%s1067 + $0x1c] sm:$0xf]
        %v1076 = vld [vmem:[%s1067 + $0x20] sm:$0xf]
        %v1077 = vld [vmem:[%s1067 + $0x24] sm:$0xf]
        %v1078 = vld [vmem:[%s1067 + $0x28] sm:$0xf]
        %v1079 = vld [vmem:[%s1067 + $0x2c] sm:$0xf]
        %v1080 = vld [vmem:[%s1067 + $0x30] sm:$0xf]
        %v1081 = vld [vmem:[%s1067 + $0x34] sm:$0xf]
        %v1082 = vld [vmem:[%s1067 + $0x38] sm:$0xf]
        %v1083 = vld [vmem:[%s1067 + $0x3c] sm:$0xf]
        %v1084 = vld [vmem:[#allocation3 + $0x8] sm:$0x1]
        %s1085 = scalar_lea.vmem [#allocation9], 384
        %v1086 = vld [vmem:[%s1085] sm:$0xf]
        %v1087 = vld [vmem:[%s1085 + $0x4] sm:$0xf]
        %v1088 = vld [vmem:[%s1085 + $0x8] sm:$0xf]
        %v1089 = vld [vmem:[%s1085 + $0xc] sm:$0xf]
        %v1090 = vld [vmem:[%s1085 + $0x10] sm:$0xf]
        %v1091 = vld [vmem:[%s1085 + $0x14] sm:$0xf]
        %v1092 = vld [vmem:[%s1085 + $0x18] sm:$0xf]
        %v1093 = vld [vmem:[%s1085 + $0x1c] sm:$0xf]
        %v1094 = vld [vmem:[%s1085 + $0x20] sm:$0xf]
        %v1095 = vld [vmem:[%s1085 + $0x24] sm:$0xf]
        %v1096 = vld [vmem:[%s1085 + $0x28] sm:$0xf]
        %v1097 = vld [vmem:[%s1085 + $0x2c] sm:$0xf]
        %v1098 = vld [vmem:[%s1085 + $0x30] sm:$0xf]
        %v1099 = vld [vmem:[%s1085 + $0x34] sm:$0xf]
        %v1100 = vld [vmem:[%s1085 + $0x38] sm:$0xf]
        %v1101 = vld [vmem:[%s1085 + $0x3c] sm:$0xf]
        %v1105 = vunpack.c.l.b16 %v1065
        %v1106 = vunpack.c.l.b16 %v1066
        %v1107 = vunpack.c.l.b16 %v1084
        %v1108 = vpack.c.b16 %v1106, %v1105
        %v1109 = vpack.c.b16 %v1107, %v1107
        %v1111 = vshrl.u32 %v1108, 16
        %v1113 = vshll.u32 %v1108, 16
        %v1115 = vrot.slane %v1113, 1
        %v1116 = vor.u32 %v1111, %v1115
        %v1118 = vshll.u32 %v1109, 16
        %v1120 = vrot.slane %v1118, 1
        %v1121 = vsel %vm475, %v1116, %v1120
        %v1139 = vunpack.c.l.b16 %v1086
        %v1140 = vunpack.c.l.b16 %v1087
        %v1141 = vunpack.c.l.b16 %v1088
        %v1142 = vunpack.c.l.b16 %v1089
        %v1143 = vunpack.c.l.b16 %v1090
        %v1144 = vunpack.c.l.b16 %v1091
        %v1145 = vunpack.c.l.b16 %v1092
        %v1146 = vunpack.c.l.b16 %v1093
        %v1147 = vunpack.c.l.b16 %v1094
        %v1148 = vunpack.c.l.b16 %v1095
        %v1149 = vunpack.c.l.b16 %v1096
        %v1150 = vunpack.c.l.b16 %v1097
        %v1151 = vunpack.c.l.b16 %v1098
        %v1152 = vunpack.c.l.b16 %v1099
        %v1153 = vunpack.c.l.b16 %v1100
        %v1154 = vunpack.c.l.b16 %v1101
        %v1155 = vpack.c.b16 %v1140, %v1139
        %v1156 = vpack.c.b16 %v1142, %v1141
        %v1157 = vpack.c.b16 %v1144, %v1143
        %v1158 = vpack.c.b16 %v1146, %v1145
        %v1159 = vpack.c.b16 %v1148, %v1147
        %v1160 = vpack.c.b16 %v1150, %v1149
        %v1161 = vpack.c.b16 %v1152, %v1151
        %v1162 = vpack.c.b16 %v1154, %v1153
        %1171 = vmatprep.subr.bf16.mxu0 0
        %1172 = vmatpush1.bf16.msra.mxu0 %v1162
        %1173 = vmatprep.subr.bf16.mxu0 0
        %1174 = vmatpush1.bf16.msra.mxu0 %v1161
        %1175 = vmatprep.subr.bf16.mxu0 0
        %1176 = vmatpush1.bf16.msra.mxu0 %v1160
        %1177 = vmatprep.subr.bf16.mxu0 0
        %1178 = vmatpush1.bf16.msra.mxu0 %v1159
        %1179 = vmatprep.subr.bf16.mxu0 0
        %1180 = vmatpush1.bf16.msra.mxu0 %v1158
        %1181 = vmatprep.subr.bf16.mxu0 0
        %1182 = vmatpush1.bf16.msra.mxu0 %v1157
        %1183 = vmatprep.subr.bf16.mxu0 0
        %1184 = vmatpush1.bf16.msra.mxu0 %v1156
        %1185 = vmatprep.subr.bf16.mxu0 0
        %1186 = vmatpush1.bf16.msra.mxu0 %v1155
        %1187 = vmatprep.subr.bf16.mxu0 0
        %1188 = vmatpush2.bf16.msra.mxu0 0
        %1189 = vmatprep.subr.bf16.mxu0 0
        %1190 = vmatpush2.bf16.msra.mxu0 0
        %1191 = vmatprep.subr.bf16.mxu0 0
        %1192 = vmatpush2.bf16.msra.mxu0 0
        %1193 = vmatprep.subr.bf16.mxu0 0
        %1194 = vmatpush2.bf16.msra.mxu0 0
        %1195 = vmatprep.subr.bf16.mxu0 0
        %1196 = vmatpush2.bf16.msra.mxu0 0
        %1197 = vmatprep.subr.bf16.mxu0 0
        %1198 = vmatpush2.bf16.msra.mxu0 0
        %1199 = vmatprep.subr.bf16.mxu0 0
        %1200 = vmatpush2.bf16.msra.mxu0 0
        %1201 = vmatprep.subr.bf16.mxu0 0
        %1202 = vmatpush2.bf16.msra.mxu0 0
        %1203 = vmatprep.mubr.bf16.mxu0 0
        %1204 = vmatmul.mubr.bf16.gmra.mxu0 %v1121
        %v1205 = vpop.f32.mrf.mxu0
        %v1206 = vadd.f32 0.0, %v1205
        %v1207 = vpop.f32.mrf.mxu0
        %v1208 = vpop.f32.mrf.mxu0
        %v1209 = vadd.f32 0.0, %v1208
        %v1210 = vpop.f32.mrf.mxu0
        %1211 = vdwg.mxu0
        %v1229 = vunpack.c.l.b16 %v1068
        %v1230 = vunpack.c.l.b16 %v1069
        %v1231 = vunpack.c.l.b16 %v1070
        %v1232 = vunpack.c.l.b16 %v1071
        %v1233 = vunpack.c.l.b16 %v1072
        %v1234 = vunpack.c.l.b16 %v1073
        %v1235 = vunpack.c.l.b16 %v1074
        %v1236 = vunpack.c.l.b16 %v1075
        %v1237 = vunpack.c.l.b16 %v1076
        %v1238 = vunpack.c.l.b16 %v1077
        %v1239 = vunpack.c.l.b16 %v1078
        %v1240 = vunpack.c.l.b16 %v1079
        %v1241 = vunpack.c.l.b16 %v1080
        %v1242 = vunpack.c.l.b16 %v1081
        %v1243 = vunpack.c.l.b16 %v1082
        %v1244 = vunpack.c.l.b16 %v1083
        %v1245 = vpack.c.b16 %v1230, %v1229
        %v1246 = vpack.c.b16 %v1232, %v1231
        %v1247 = vpack.c.b16 %v1234, %v1233
        %v1248 = vpack.c.b16 %v1236, %v1235
        %v1249 = vpack.c.b16 %v1238, %v1237
        %v1250 = vpack.c.b16 %v1240, %v1239
        %v1251 = vpack.c.b16 %v1242, %v1241
        %v1252 = vpack.c.b16 %v1244, %v1243
        %1261 = vmatprep.subr.bf16.mxu0 0
        %1262 = vmatpush1.bf16.msra.mxu0 %v1252
        %1263 = vmatprep.subr.bf16.mxu0 0
        %1264 = vmatpush1.bf16.msra.mxu0 %v1251
        %1265 = vmatprep.subr.bf16.mxu0 0
        %1266 = vmatpush1.bf16.msra.mxu0 %v1250
        %1267 = vmatprep.subr.bf16.mxu0 0
        %1268 = vmatpush1.bf16.msra.mxu0 %v1249
        %1269 = vmatprep.subr.bf16.mxu0 0
        %1270 = vmatpush1.bf16.msra.mxu0 %v1248
        %1271 = vmatprep.subr.bf16.mxu0 0
        %1272 = vmatpush1.bf16.msra.mxu0 %v1247
        %1273 = vmatprep.subr.bf16.mxu0 0
        %1274 = vmatpush1.bf16.msra.mxu0 %v1246
        %1275 = vmatprep.subr.bf16.mxu0 0
        %1276 = vmatpush1.bf16.msra.mxu0 %v1245
        %1277 = vmatprep.subr.bf16.mxu0 0
        %1278 = vmatpush2.bf16.msra.mxu0 0
        %1279 = vmatprep.subr.bf16.mxu0 0
        %1280 = vmatpush2.bf16.msra.mxu0 0
        %1281 = vmatprep.subr.bf16.mxu0 0
        %1282 = vmatpush2.bf16.msra.mxu0 0
        %1283 = vmatprep.subr.bf16.mxu0 0
        %1284 = vmatpush2.bf16.msra.mxu0 0
        %1285 = vmatprep.subr.bf16.mxu0 0
        %1286 = vmatpush2.bf16.msra.mxu0 0
        %1287 = vmatprep.subr.bf16.mxu0 0
        %1288 = vmatpush2.bf16.msra.mxu0 0
        %1289 = vmatprep.subr.bf16.mxu0 0
        %1290 = vmatpush2.bf16.msra.mxu0 0
        %1291 = vmatprep.subr.bf16.mxu0 0
        %1292 = vmatpush2.bf16.msra.mxu0 0
        %1293 = vmatprep.mubr.bf16.mxu0 0
        %1294 = vmatmul.mubr.bf16.gmra.mxu0 %v1108
        %v1295 = vpop.f32.mrf.mxu0
        %v1296 = vadd.f32 %v1206, %v1295
        %v1297 = vpop.f32.mrf.mxu0
        %v1298 = vpop.f32.mrf.mxu0
        %v1299 = vadd.f32 %v1209, %v1298
        %v1300 = vpop.f32.mrf.mxu0
        %1301 = vdwg.mxu0
        %v1302 = vld [vmem:[#allocation3] sm:$0xe]
        %s1303 = scalar_lea.vmem [#allocation9], 448
        %v1304 = vld [vmem:[%s1303] sm:$0xf]
        %v1305 = vld [vmem:[%s1303 + $0x4] sm:$0xf]
        %v1306 = vld [vmem:[%s1303 + $0x8] sm:$0xf]
        %v1307 = vld [vmem:[%s1303 + $0xc] sm:$0xf]
        %v1308 = vld [vmem:[%s1303 + $0x10] sm:$0xf]
        %v1309 = vld [vmem:[%s1303 + $0x14] sm:$0xf]
        %v1310 = vld [vmem:[%s1303 + $0x18] sm:$0xf]
        %v1311 = vld [vmem:[%s1303 + $0x1c] sm:$0xf]
        %v1312 = vld [vmem:[%s1303 + $0x20] sm:$0xf]
        %v1313 = vld [vmem:[%s1303 + $0x24] sm:$0xf]
        %v1314 = vld [vmem:[%s1303 + $0x28] sm:$0xf]
        %v1315 = vld [vmem:[%s1303 + $0x2c] sm:$0xf]
        %v1316 = vld [vmem:[%s1303 + $0x30] sm:$0xf]
        %v1317 = vld [vmem:[%s1303 + $0x34] sm:$0xf]
        %v1318 = vld [vmem:[%s1303 + $0x38] sm:$0xf]
        %v1319 = vld [vmem:[%s1303 + $0x3c] sm:$0xf]
        %v1321 = vunpack.c.l.b16 %v1302
        %v1322 = vpack.c.b16 %v1106, %v1321
        %v1323 = vrot.slane %v1322, 1
        %v1324 = vrot.slane %v1109, 1
        %v1325 = vsel %vm689, %v1323, %v1324
        %v1343 = vunpack.c.l.b16 %v1304
        %v1344 = vunpack.c.l.b16 %v1305
        %v1345 = vunpack.c.l.b16 %v1306
        %v1346 = vunpack.c.l.b16 %v1307
        %v1347 = vunpack.c.l.b16 %v1308
        %v1348 = vunpack.c.l.b16 %v1309
        %v1349 = vunpack.c.l.b16 %v1310
        %v1350 = vunpack.c.l.b16 %v1311
        %v1351 = vunpack.c.l.b16 %v1312
        %v1352 = vunpack.c.l.b16 %v1313
        %v1353 = vunpack.c.l.b16 %v1314
        %v1354 = vunpack.c.l.b16 %v1315
        %v1355 = vunpack.c.l.b16 %v1316
        %v1356 = vunpack.c.l.b16 %v1317
        %v1357 = vunpack.c.l.b16 %v1318
        %v1358 = vunpack.c.l.b16 %v1319
        %v1359 = vpack.c.b16 %v1344, %v1343
        %v1360 = vpack.c.b16 %v1346, %v1345
        %v1361 = vpack.c.b16 %v1348, %v1347
        %v1362 = vpack.c.b16 %v1350, %v1349
        %v1363 = vpack.c.b16 %v1352, %v1351
        %v1364 = vpack.c.b16 %v1354, %v1353
        %v1365 = vpack.c.b16 %v1356, %v1355
        %v1366 = vpack.c.b16 %v1358, %v1357
        %1375 = vmatprep.subr.bf16.mxu0 0
        %1376 = vmatpush1.bf16.msra.mxu0 %v1366
        %1377 = vmatprep.subr.bf16.mxu0 0
        %1378 = vmatpush1.bf16.msra.mxu0 %v1365
        %1379 = vmatprep.subr.bf16.mxu0 0
        %1380 = vmatpush1.bf16.msra.mxu0 %v1364
        %1381 = vmatprep.subr.bf16.mxu0 0
        %1382 = vmatpush1.bf16.msra.mxu0 %v1363
        %1383 = vmatprep.subr.bf16.mxu0 0
        %1384 = vmatpush1.bf16.msra.mxu0 %v1362
        %1385 = vmatprep.subr.bf16.mxu0 0
        %1386 = vmatpush1.bf16.msra.mxu0 %v1361
        %1387 = vmatprep.subr.bf16.mxu0 0
        %1388 = vmatpush1.bf16.msra.mxu0 %v1360
        %1389 = vmatprep.subr.bf16.mxu0 0
        %1390 = vmatpush1.bf16.msra.mxu0 %v1359
        %1391 = vmatprep.subr.bf16.mxu0 0
        %1392 = vmatpush2.bf16.msra.mxu0 0
        %1393 = vmatprep.subr.bf16.mxu0 0
        %1394 = vmatpush2.bf16.msra.mxu0 0
        %1395 = vmatprep.subr.bf16.mxu0 0
        %1396 = vmatpush2.bf16.msra.mxu0 0
        %1397 = vmatprep.subr.bf16.mxu0 0
        %1398 = vmatpush2.bf16.msra.mxu0 0
        %1399 = vmatprep.subr.bf16.mxu0 0
        %1400 = vmatpush2.bf16.msra.mxu0 0
        %1401 = vmatprep.subr.bf16.mxu0 0
        %1402 = vmatpush2.bf16.msra.mxu0 0
        %1403 = vmatprep.subr.bf16.mxu0 0
        %1404 = vmatpush2.bf16.msra.mxu0 0
        %1405 = vmatprep.subr.bf16.mxu0 0
        %1406 = vmatpush2.bf16.msra.mxu0 0
        %1407 = vmatprep.mubr.bf16.mxu0 0
        %1408 = vmatmul.mubr.bf16.gmra.mxu0 %v1325
        %v1409 = vpop.f32.mrf.mxu0
        %v1410 = vadd.f32 0.0, %v1409
        %v1411 = vpop.f32.mrf.mxu0
        %v1412 = vpop.f32.mrf.mxu0
        %v1413 = vadd.f32 0.0, %v1412
        %v1414 = vpop.f32.mrf.mxu0
        %1415 = vdwg.mxu0
        %v1416 = vadd.f32 %v1296, %v1410
        %v1417 = vadd.f32 %v1299, %v1413
        %v1418 = vld [vmem:[#allocation3 + $0x8] sm:$0x3]
        %s1419 = scalar_lea.vmem [#allocation9], 512
        %v1420 = vld [vmem:[%s1419] sm:$0xf]
        %v1421 = vld [vmem:[%s1419 + $0x4] sm:$0xf]
        %v1422 = vld [vmem:[%s1419 + $0x8] sm:$0xf]
        %v1423 = vld [vmem:[%s1419 + $0xc] sm:$0xf]
        %v1424 = vld [vmem:[%s1419 + $0x10] sm:$0xf]
        %v1425 = vld [vmem:[%s1419 + $0x14] sm:$0xf]
        %v1426 = vld [vmem:[%s1419 + $0x18] sm:$0xf]
        %v1427 = vld [vmem:[%s1419 + $0x1c] sm:$0xf]
        %v1428 = vld [vmem:[%s1419 + $0x20] sm:$0xf]
        %v1429 = vld [vmem:[%s1419 + $0x24] sm:$0xf]
        %v1430 = vld [vmem:[%s1419 + $0x28] sm:$0xf]
        %v1431 = vld [vmem:[%s1419 + $0x2c] sm:$0xf]
        %v1432 = vld [vmem:[%s1419 + $0x30] sm:$0xf]
        %v1433 = vld [vmem:[%s1419 + $0x34] sm:$0xf]
        %v1434 = vld [vmem:[%s1419 + $0x38] sm:$0xf]
        %v1435 = vld [vmem:[%s1419 + $0x3c] sm:$0xf]
        %v1437 = vunpack.c.l.b16 %v1418
        %v1438 = vpack.c.b16 %v1437, %v1437
        %v1440 = vshrl.u32 %v1322, 16
        %v1442 = vrot.slane %v1440, 1
        %v1443 = vshll.u32 %v1322, 16
        %v1445 = vrot.slane %v1443, 2
        %v1446 = vor.u32 %v1442, %v1445
        %v1448 = vshrl.u32 %v1438, 16
        %v1450 = vrot.slane %v1448, 1
        %v1451 = vshll.u32 %v1438, 16
        %v1453 = vrot.slane %v1451, 2
        %v1454 = vor.u32 %v1450, %v1453
        %v1455 = vsel %vm806, %v1446, %v1454
        %v1473 = vunpack.c.l.b16 %v1420
        %v1474 = vunpack.c.l.b16 %v1421
        %v1475 = vunpack.c.l.b16 %v1422
        %v1476 = vunpack.c.l.b16 %v1423
        %v1477 = vunpack.c.l.b16 %v1424
        %v1478 = vunpack.c.l.b16 %v1425
        %v1479 = vunpack.c.l.b16 %v1426
        %v1480 = vunpack.c.l.b16 %v1427
        %v1481 = vunpack.c.l.b16 %v1428
        %v1482 = vunpack.c.l.b16 %v1429
        %v1483 = vunpack.c.l.b16 %v1430
        %v1484 = vunpack.c.l.b16 %v1431
        %v1485 = vunpack.c.l.b16 %v1432
        %v1486 = vunpack.c.l.b16 %v1433
        %v1487 = vunpack.c.l.b16 %v1434
        %v1488 = vunpack.c.l.b16 %v1435
        %v1489 = vpack.c.b16 %v1474, %v1473
        %v1490 = vpack.c.b16 %v1476, %v1475
        %v1491 = vpack.c.b16 %v1478, %v1477
        %v1492 = vpack.c.b16 %v1480, %v1479
        %v1493 = vpack.c.b16 %v1482, %v1481
        %v1494 = vpack.c.b16 %v1484, %v1483
        %v1495 = vpack.c.b16 %v1486, %v1485
        %v1496 = vpack.c.b16 %v1488, %v1487
        %1505 = vmatprep.subr.bf16.mxu0 0
        %1506 = vmatpush1.bf16.msra.mxu0 %v1496
        %1507 = vmatprep.subr.bf16.mxu0 0
        %1508 = vmatpush1.bf16.msra.mxu0 %v1495
        %1509 = vmatprep.subr.bf16.mxu0 0
        %1510 = vmatpush1.bf16.msra.mxu0 %v1494
        %1511 = vmatprep.subr.bf16.mxu0 0
        %1512 = vmatpush1.bf16.msra.mxu0 %v1493
        %1513 = vmatprep.subr.bf16.mxu0 0
        %1514 = vmatpush1.bf16.msra.mxu0 %v1492
        %1515 = vmatprep.subr.bf16.mxu0 0
        %1516 = vmatpush1.bf16.msra.mxu0 %v1491
        %1517 = vmatprep.subr.bf16.mxu0 0
        %1518 = vmatpush1.bf16.msra.mxu0 %v1490
        %1519 = vmatprep.subr.bf16.mxu0 0
        %1520 = vmatpush1.bf16.msra.mxu0 %v1489
        %1521 = vmatprep.subr.bf16.mxu0 0
        %1522 = vmatpush2.bf16.msra.mxu0 0
        %1523 = vmatprep.subr.bf16.mxu0 0
        %1524 = vmatpush2.bf16.msra.mxu0 0
        %1525 = vmatprep.subr.bf16.mxu0 0
        %1526 = vmatpush2.bf16.msra.mxu0 0
        %1527 = vmatprep.subr.bf16.mxu0 0
        %1528 = vmatpush2.bf16.msra.mxu0 0
        %1529 = vmatprep.subr.bf16.mxu0 0
        %1530 = vmatpush2.bf16.msra.mxu0 0
        %1531 = vmatprep.subr.bf16.mxu0 0
        %1532 = vmatpush2.bf16.msra.mxu0 0
        %1533 = vmatprep.subr.bf16.mxu0 0
        %1534 = vmatpush2.bf16.msra.mxu0 0
        %1535 = vmatprep.subr.bf16.mxu0 0
        %1536 = vmatpush2.bf16.msra.mxu0 0
        %1537 = vmatprep.mubr.bf16.mxu0 0
        %1538 = vmatmul.mubr.bf16.gmra.mxu0 %v1455
        %v1539 = vpop.f32.mrf.mxu0
        %v1540 = vadd.f32 0.0, %v1539
        %v1541 = vpop.f32.mrf.mxu0
        %v1542 = vpop.f32.mrf.mxu0
        %v1543 = vadd.f32 0.0, %v1542
        %v1544 = vpop.f32.mrf.mxu0
        %1545 = vdwg.mxu0
        %v1546 = vadd.f32 %v1416, %v1540
        %v1547 = vadd.f32 %v1417, %v1543
        %v1548 = vld [vmem:[#allocation3] sm:$0xc]
        %s1549 = scalar_lea.vmem [#allocation9], 576
        %v1550 = vld [vmem:[%s1549] sm:$0xf]
        %v1551 = vld [vmem:[%s1549 + $0x4] sm:$0xf]
        %v1552 = vld [vmem:[%s1549 + $0x8] sm:$0xf]
        %v1553 = vld [vmem:[%s1549 + $0xc] sm:$0xf]
        %v1554 = vld [vmem:[%s1549 + $0x10] sm:$0xf]
        %v1555 = vld [vmem:[%s1549 + $0x14] sm:$0xf]
        %v1556 = vld [vmem:[%s1549 + $0x18] sm:$0xf]
        %v1557 = vld [vmem:[%s1549 + $0x1c] sm:$0xf]
        %v1558 = vld [vmem:[%s1549 + $0x20] sm:$0xf]
        %v1559 = vld [vmem:[%s1549 + $0x24] sm:$0xf]
        %v1560 = vld [vmem:[%s1549 + $0x28] sm:$0xf]
        %v1561 = vld [vmem:[%s1549 + $0x2c] sm:$0xf]
        %v1562 = vld [vmem:[%s1549 + $0x30] sm:$0xf]
        %v1563 = vld [vmem:[%s1549 + $0x34] sm:$0xf]
        %v1564 = vld [vmem:[%s1549 + $0x38] sm:$0xf]
        %v1565 = vld [vmem:[%s1549 + $0x3c] sm:$0xf]
        %v1567 = vunpack.c.l.b16 %v1548
        %v1568 = vpack.c.b16 %v1106, %v1567
        %v1569 = vrot.slane %v1568, 2
        %v1570 = vrot.slane %v1438, 2
        %v1571 = vsel %vm937, %v1569, %v1570
        %v1589 = vunpack.c.l.b16 %v1550
        %v1590 = vunpack.c.l.b16 %v1551
        %v1591 = vunpack.c.l.b16 %v1552
        %v1592 = vunpack.c.l.b16 %v1553
        %v1593 = vunpack.c.l.b16 %v1554
        %v1594 = vunpack.c.l.b16 %v1555
        %v1595 = vunpack.c.l.b16 %v1556
        %v1596 = vunpack.c.l.b16 %v1557
        %v1597 = vunpack.c.l.b16 %v1558
        %v1598 = vunpack.c.l.b16 %v1559
        %v1599 = vunpack.c.l.b16 %v1560
        %v1600 = vunpack.c.l.b16 %v1561
        %v1601 = vunpack.c.l.b16 %v1562
        %v1602 = vunpack.c.l.b16 %v1563
        %v1603 = vunpack.c.l.b16 %v1564
        %v1604 = vunpack.c.l.b16 %v1565
        %v1605 = vpack.c.b16 %v1590, %v1589
        %v1606 = vpack.c.b16 %v1592, %v1591
        %v1607 = vpack.c.b16 %v1594, %v1593
        %v1608 = vpack.c.b16 %v1596, %v1595
        %v1609 = vpack.c.b16 %v1598, %v1597
        %v1610 = vpack.c.b16 %v1600, %v1599
        %v1611 = vpack.c.b16 %v1602, %v1601
        %v1612 = vpack.c.b16 %v1604, %v1603
        %1621 = vmatprep.subr.bf16.mxu0 0
        %1622 = vmatpush1.bf16.msra.mxu0 %v1612
        %1623 = vmatprep.subr.bf16.mxu0 0
        %1624 = vmatpush1.bf16.msra.mxu0 %v1611
        %1625 = vmatprep.subr.bf16.mxu0 0
        %1626 = vmatpush1.bf16.msra.mxu0 %v1610
        %1627 = vmatprep.subr.bf16.mxu0 0
        %1628 = vmatpush1.bf16.msra.mxu0 %v1609
        %1629 = vmatprep.subr.bf16.mxu0 0
        %1630 = vmatpush1.bf16.msra.mxu0 %v1608
        %1631 = vmatprep.subr.bf16.mxu0 0
        %1632 = vmatpush1.bf16.msra.mxu0 %v1607
        %1633 = vmatprep.subr.bf16.mxu0 0
        %1634 = vmatpush1.bf16.msra.mxu0 %v1606
        %1635 = vmatprep.subr.bf16.mxu0 0
        %1636 = vmatpush1.bf16.msra.mxu0 %v1605
        %1637 = vmatprep.subr.bf16.mxu0 0
        %1638 = vmatpush2.bf16.msra.mxu0 0
        %1639 = vmatprep.subr.bf16.mxu0 0
        %1640 = vmatpush2.bf16.msra.mxu0 0
        %1641 = vmatprep.subr.bf16.mxu0 0
        %1642 = vmatpush2.bf16.msra.mxu0 0
        %1643 = vmatprep.subr.bf16.mxu0 0
        %1644 = vmatpush2.bf16.msra.mxu0 0
        %1645 = vmatprep.subr.bf16.mxu0 0
        %1646 = vmatpush2.bf16.msra.mxu0 0
        %1647 = vmatprep.subr.bf16.mxu0 0
        %1648 = vmatpush2.bf16.msra.mxu0 0
        %1649 = vmatprep.subr.bf16.mxu0 0
        %1650 = vmatpush2.bf16.msra.mxu0 0
        %1651 = vmatprep.subr.bf16.mxu0 0
        %1652 = vmatpush2.bf16.msra.mxu0 0
        %1653 = vmatprep.mubr.bf16.mxu0 0
        %1654 = vmatmul.mubr.bf16.gmra.mxu0 %v1571
        %v1655 = vpop.f32.mrf.mxu0
        %v1656 = vadd.f32 0.0, %v1655
        %v1657 = vpop.f32.mrf.mxu0
        %v1658 = vpop.f32.mrf.mxu0
        %v1659 = vadd.f32 0.0, %v1658
        %v1660 = vpop.f32.mrf.mxu0
        %1661 = vdwg.mxu0
        %v1662 = vadd.f32 %v1546, %v1656
        %v1663 = vadd.f32 %v1547, %v1659
        %s1664 = scalar_lea.vmem %s3, 1
        %v1665 = vld [vmem:[%s1664] sm:$0x1]
        %v1667 = vlaneseq
        %v1668 = vshrl.u32 %v1667, 7
        %v1669 = vsub.s32 0, %v1668
        %v1670 = vrot.slane %v1665, %v1669
        %v1672 = vadd.f32 %v1662, %v1670
        %v1673 = vadd.f32 %v1663, %v1670
        %v1674 = vmax.f32 %v1672, 0.0
        %v1675 = vmax.f32 %v1673, 0.0
        %v1676 = vmin.f32 %v1674, 20.0
        %v1677 = vmin.f32 %v1675, 20.0
        %v1678 = vsel %vm293, %v1676, 0.0
        %v1679 = vsel %vm294, %v1677, 0.0
        %v1680 = vpack.c.bf16 %v1679, %v1678
        %v1682 = vunpack.c.l.b16 %v1680
        %v1683 = vunpack.c.h.b16 %v1680
        %v1684 = vpack.c.b16 %v1682, %v1682
        %v1685 = vpack.c.b16 %v1683, %v1683
        %v1686 = vrot.slane %v1684, 7
        %v1687 = vrot.slane %v1686, 4
        %v1688 = vrot.slane %v1685, 7
        %v1689 = vsel %vm419, %v1687, %v1688
        %v1690 = vrot.slane %v1688, 4
        %1694 = vst [vmem:[#allocation2] sm:$0xe] %v1686
        %1695 = vst [vmem:[#allocation2 + $0x4] sm:$0xf] %v1689
        %1696 = vst [vmem:[#allocation2 + $0x8] sm:$0x1] %v1690
        %v1697 = vld [vmem:[#allocation2] sm:$0xf]
        %v1698 = vld [vmem:[#allocation2 + $0x4] sm:$0xf]
        %s1699 = scalar_lea.vmem [#allocation9], 640
        %v1700 = vld [vmem:[%s1699] sm:$0xf]
        %v1701 = vld [vmem:[%s1699 + $0x4] sm:$0xf]
        %v1702 = vld [vmem:[%s1699 + $0x8] sm:$0xf]
        %v1703 = vld [vmem:[%s1699 + $0xc] sm:$0xf]
        %v1704 = vld [vmem:[%s1699 + $0x10] sm:$0xf]
        %v1705 = vld [vmem:[%s1699 + $0x14] sm:$0xf]
        %v1706 = vld [vmem:[%s1699 + $0x18] sm:$0xf]
        %v1707 = vld [vmem:[%s1699 + $0x1c] sm:$0xf]
        %v1708 = vld [vmem:[%s1699 + $0x20] sm:$0xf]
        %v1709 = vld [vmem:[%s1699 + $0x24] sm:$0xf]
        %v1710 = vld [vmem:[%s1699 + $0x28] sm:$0xf]
        %v1711 = vld [vmem:[%s1699 + $0x2c] sm:$0xf]
        %v1712 = vld [vmem:[%s1699 + $0x30] sm:$0xf]
        %v1713 = vld [vmem:[%s1699 + $0x34] sm:$0xf]
        %v1714 = vld [vmem:[%s1699 + $0x38] sm:$0xf]
        %v1715 = vld [vmem:[%s1699 + $0x3c] sm:$0xf]
        %v1716 = vld [vmem:[#allocation2 + $0x8] sm:$0x1]
        %s1717 = scalar_lea.vmem [#allocation9], 704
        %v1718 = vld [vmem:[%s1717] sm:$0xf]
        %v1719 = vld [vmem:[%s1717 + $0x4] sm:$0xf]
        %v1720 = vld [vmem:[%s1717 + $0x8] sm:$0xf]
        %v1721 = vld [vmem:[%s1717 + $0xc] sm:$0xf]
        %v1722 = vld [vmem:[%s1717 + $0x10] sm:$0xf]
        %v1723 = vld [vmem:[%s1717 + $0x14] sm:$0xf]
        %v1724 = vld [vmem:[%s1717 + $0x18] sm:$0xf]
        %v1725 = vld [vmem:[%s1717 + $0x1c] sm:$0xf]
        %v1726 = vld [vmem:[%s1717 + $0x20] sm:$0xf]
        %v1727 = vld [vmem:[%s1717 + $0x24] sm:$0xf]
        %v1728 = vld [vmem:[%s1717 + $0x28] sm:$0xf]
        %v1729 = vld [vmem:[%s1717 + $0x2c] sm:$0xf]
        %v1730 = vld [vmem:[%s1717 + $0x30] sm:$0xf]
        %v1731 = vld [vmem:[%s1717 + $0x34] sm:$0xf]
        %v1732 = vld [vmem:[%s1717 + $0x38] sm:$0xf]
        %v1733 = vld [vmem:[%s1717 + $0x3c] sm:$0xf]
        %v1737 = vunpack.c.l.b16 %v1697
        %v1738 = vunpack.c.l.b16 %v1698
        %v1739 = vunpack.c.l.b16 %v1716
        %v1740 = vpack.c.b16 %v1738, %v1737
        %v1741 = vpack.c.b16 %v1739, %v1739
        %v1743 = vshrl.u32 %v1740, 16
        %v1745 = vshll.u32 %v1740, 16
        %v1747 = vrot.slane %v1745, 1
        %v1748 = vor.u32 %v1743, %v1747
        %v1750 = vshll.u32 %v1741, 16
        %v1752 = vrot.slane %v1750, 1
        %v1753 = vsel %vm475, %v1748, %v1752
        %v1771 = vunpack.c.l.b16 %v1718
        %v1772 = vunpack.c.l.b16 %v1719
        %v1773 = vunpack.c.l.b16 %v1720
        %v1774 = vunpack.c.l.b16 %v1721
        %v1775 = vunpack.c.l.b16 %v1722
        %v1776 = vunpack.c.l.b16 %v1723
        %v1777 = vunpack.c.l.b16 %v1724
        %v1778 = vunpack.c.l.b16 %v1725
        %v1779 = vunpack.c.l.b16 %v1726
        %v1780 = vunpack.c.l.b16 %v1727
        %v1781 = vunpack.c.l.b16 %v1728
        %v1782 = vunpack.c.l.b16 %v1729
        %v1783 = vunpack.c.l.b16 %v1730
        %v1784 = vunpack.c.l.b16 %v1731
        %v1785 = vunpack.c.l.b16 %v1732
        %v1786 = vunpack.c.l.b16 %v1733
        %v1787 = vpack.c.b16 %v1772, %v1771
        %v1788 = vpack.c.b16 %v1774, %v1773
        %v1789 = vpack.c.b16 %v1776, %v1775
        %v1790 = vpack.c.b16 %v1778, %v1777
        %v1791 = vpack.c.b16 %v1780, %v1779
        %v1792 = vpack.c.b16 %v1782, %v1781
        %v1793 = vpack.c.b16 %v1784, %v1783
        %v1794 = vpack.c.b16 %v1786, %v1785
        %1803 = vmatprep.subr.bf16.mxu0 0
        %1804 = vmatpush1.bf16.msra.mxu0 %v1794
        %1805 = vmatprep.subr.bf16.mxu0 0
        %1806 = vmatpush1.bf16.msra.mxu0 %v1793
        %1807 = vmatprep.subr.bf16.mxu0 0
        %1808 = vmatpush1.bf16.msra.mxu0 %v1792
        %1809 = vmatprep.subr.bf16.mxu0 0
        %1810 = vmatpush1.bf16.msra.mxu0 %v1791
        %1811 = vmatprep.subr.bf16.mxu0 0
        %1812 = vmatpush1.bf16.msra.mxu0 %v1790
        %1813 = vmatprep.subr.bf16.mxu0 0
        %1814 = vmatpush1.bf16.msra.mxu0 %v1789
        %1815 = vmatprep.subr.bf16.mxu0 0
        %1816 = vmatpush1.bf16.msra.mxu0 %v1788
        %1817 = vmatprep.subr.bf16.mxu0 0
        %1818 = vmatpush1.bf16.msra.mxu0 %v1787
        %1819 = vmatprep.subr.bf16.mxu0 0
        %1820 = vmatpush2.bf16.msra.mxu0 0
        %1821 = vmatprep.subr.bf16.mxu0 0
        %1822 = vmatpush2.bf16.msra.mxu0 0
        %1823 = vmatprep.subr.bf16.mxu0 0
        %1824 = vmatpush2.bf16.msra.mxu0 0
        %1825 = vmatprep.subr.bf16.mxu0 0
        %1826 = vmatpush2.bf16.msra.mxu0 0
        %1827 = vmatprep.subr.bf16.mxu0 0
        %1828 = vmatpush2.bf16.msra.mxu0 0
        %1829 = vmatprep.subr.bf16.mxu0 0
        %1830 = vmatpush2.bf16.msra.mxu0 0
        %1831 = vmatprep.subr.bf16.mxu0 0
        %1832 = vmatpush2.bf16.msra.mxu0 0
        %1833 = vmatprep.subr.bf16.mxu0 0
        %1834 = vmatpush2.bf16.msra.mxu0 0
        %1835 = vmatprep.mubr.bf16.mxu0 0
        %1836 = vmatmul.mubr.bf16.gmra.mxu0 %v1753
        %v1837 = vpop.f32.mrf.mxu0
        %v1838 = vadd.f32 0.0, %v1837
        %v1839 = vpop.f32.mrf.mxu0
        %v1840 = vpop.f32.mrf.mxu0
        %v1841 = vadd.f32 0.0, %v1840
        %v1842 = vpop.f32.mrf.mxu0
        %1843 = vdwg.mxu0
        %v1861 = vunpack.c.l.b16 %v1700
        %v1862 = vunpack.c.l.b16 %v1701
        %v1863 = vunpack.c.l.b16 %v1702
        %v1864 = vunpack.c.l.b16 %v1703
        %v1865 = vunpack.c.l.b16 %v1704
        %v1866 = vunpack.c.l.b16 %v1705
        %v1867 = vunpack.c.l.b16 %v1706
        %v1868 = vunpack.c.l.b16 %v1707
        %v1869 = vunpack.c.l.b16 %v1708
        %v1870 = vunpack.c.l.b16 %v1709
        %v1871 = vunpack.c.l.b16 %v1710
        %v1872 = vunpack.c.l.b16 %v1711
        %v1873 = vunpack.c.l.b16 %v1712
        %v1874 = vunpack.c.l.b16 %v1713
        %v1875 = vunpack.c.l.b16 %v1714
        %v1876 = vunpack.c.l.b16 %v1715
        %v1877 = vpack.c.b16 %v1862, %v1861
        %v1878 = vpack.c.b16 %v1864, %v1863
        %v1879 = vpack.c.b16 %v1866, %v1865
        %v1880 = vpack.c.b16 %v1868, %v1867
        %v1881 = vpack.c.b16 %v1870, %v1869
        %v1882 = vpack.c.b16 %v1872, %v1871
        %v1883 = vpack.c.b16 %v1874, %v1873
        %v1884 = vpack.c.b16 %v1876, %v1875
        %1893 = vmatprep.subr.bf16.mxu0 0
        %1894 = vmatpush1.bf16.msra.mxu0 %v1884
        %1895 = vmatprep.subr.bf16.mxu0 0
        %1896 = vmatpush1.bf16.msra.mxu0 %v1883
        %1897 = vmatprep.subr.bf16.mxu0 0
        %1898 = vmatpush1.bf16.msra.mxu0 %v1882
        %1899 = vmatprep.subr.bf16.mxu0 0
        %1900 = vmatpush1.bf16.msra.mxu0 %v1881
        %1901 = vmatprep.subr.bf16.mxu0 0
        %1902 = vmatpush1.bf16.msra.mxu0 %v1880
        %1903 = vmatprep.subr.bf16.mxu0 0
        %1904 = vmatpush1.bf16.msra.mxu0 %v1879
        %1905 = vmatprep.subr.bf16.mxu0 0
        %1906 = vmatpush1.bf16.msra.mxu0 %v1878
        %1907 = vmatprep.subr.bf16.mxu0 0
        %1908 = vmatpush1.bf16.msra.mxu0 %v1877
        %1909 = vmatprep.subr.bf16.mxu0 0
        %1910 = vmatpush2.bf16.msra.mxu0 0
        %1911 = vmatprep.subr.bf16.mxu0 0
        %1912 = vmatpush2.bf16.msra.mxu0 0
        %1913 = vmatprep.subr.bf16.mxu0 0
        %1914 = vmatpush2.bf16.msra.mxu0 0
        %1915 = vmatprep.subr.bf16.mxu0 0
        %1916 = vmatpush2.bf16.msra.mxu0 0
        %1917 = vmatprep.subr.bf16.mxu0 0
        %1918 = vmatpush2.bf16.msra.mxu0 0
        %1919 = vmatprep.subr.bf16.mxu0 0
        %1920 = vmatpush2.bf16.msra.mxu0 0
        %1921 = vmatprep.subr.bf16.mxu0 0
        %1922 = vmatpush2.bf16.msra.mxu0 0
        %1923 = vmatprep.subr.bf16.mxu0 0
        %1924 = vmatpush2.bf16.msra.mxu0 0
        %1925 = vmatprep.mubr.bf16.mxu0 0
        %1926 = vmatmul.mubr.bf16.gmra.mxu0 %v1740
        %v1927 = vpop.f32.mrf.mxu0
        %v1928 = vadd.f32 %v1838, %v1927
        %v1929 = vpop.f32.mrf.mxu0
        %v1930 = vpop.f32.mrf.mxu0
        %v1931 = vadd.f32 %v1841, %v1930
        %v1932 = vpop.f32.mrf.mxu0
        %1933 = vdwg.mxu0
        %v1934 = vld [vmem:[#allocation2] sm:$0xe]
        %s1935 = scalar_lea.vmem [#allocation9], 768
        %v1936 = vld [vmem:[%s1935] sm:$0xf]
        %v1937 = vld [vmem:[%s1935 + $0x4] sm:$0xf]
        %v1938 = vld [vmem:[%s1935 + $0x8] sm:$0xf]
        %v1939 = vld [vmem:[%s1935 + $0xc] sm:$0xf]
        %v1940 = vld [vmem:[%s1935 + $0x10] sm:$0xf]
        %v1941 = vld [vmem:[%s1935 + $0x14] sm:$0xf]
        %v1942 = vld [vmem:[%s1935 + $0x18] sm:$0xf]
        %v1943 = vld [vmem:[%s1935 + $0x1c] sm:$0xf]
        %v1944 = vld [vmem:[%s1935 + $0x20] sm:$0xf]
        %v1945 = vld [vmem:[%s1935 + $0x24] sm:$0xf]
        %v1946 = vld [vmem:[%s1935 + $0x28] sm:$0xf]
        %v1947 = vld [vmem:[%s1935 + $0x2c] sm:$0xf]
        %v1948 = vld [vmem:[%s1935 + $0x30] sm:$0xf]
        %v1949 = vld [vmem:[%s1935 + $0x34] sm:$0xf]
        %v1950 = vld [vmem:[%s1935 + $0x38] sm:$0xf]
        %v1951 = vld [vmem:[%s1935 + $0x3c] sm:$0xf]
        %v1953 = vunpack.c.l.b16 %v1934
        %v1954 = vpack.c.b16 %v1738, %v1953
        %v1955 = vrot.slane %v1954, 1
        %v1956 = vrot.slane %v1741, 1
        %v1957 = vsel %vm689, %v1955, %v1956
        %v1975 = vunpack.c.l.b16 %v1936
        %v1976 = vunpack.c.l.b16 %v1937
        %v1977 = vunpack.c.l.b16 %v1938
        %v1978 = vunpack.c.l.b16 %v1939
        %v1979 = vunpack.c.l.b16 %v1940
        %v1980 = vunpack.c.l.b16 %v1941
        %v1981 = vunpack.c.l.b16 %v1942
        %v1982 = vunpack.c.l.b16 %v1943
        %v1983 = vunpack.c.l.b16 %v1944
        %v1984 = vunpack.c.l.b16 %v1945
        %v1985 = vunpack.c.l.b16 %v1946
        %v1986 = vunpack.c.l.b16 %v1947
        %v1987 = vunpack.c.l.b16 %v1948
        %v1988 = vunpack.c.l.b16 %v1949
        %v1989 = vunpack.c.l.b16 %v1950
        %v1990 = vunpack.c.l.b16 %v1951
        %v1991 = vpack.c.b16 %v1976, %v1975
        %v1992 = vpack.c.b16 %v1978, %v1977
        %v1993 = vpack.c.b16 %v1980, %v1979
        %v1994 = vpack.c.b16 %v1982, %v1981
        %v1995 = vpack.c.b16 %v1984, %v1983
        %v1996 = vpack.c.b16 %v1986, %v1985
        %v1997 = vpack.c.b16 %v1988, %v1987
        %v1998 = vpack.c.b16 %v1990, %v1989
        %2007 = vmatprep.subr.bf16.mxu0 0
        %2008 = vmatpush1.bf16.msra.mxu0 %v1998
        %2009 = vmatprep.subr.bf16.mxu0 0
        %2010 = vmatpush1.bf16.msra.mxu0 %v1997
        %2011 = vmatprep.subr.bf16.mxu0 0
        %2012 = vmatpush1.bf16.msra.mxu0 %v1996
        %2013 = vmatprep.subr.bf16.mxu0 0
        %2014 = vmatpush1.bf16.msra.mxu0 %v1995
        %2015 = vmatprep.subr.bf16.mxu0 0
        %2016 = vmatpush1.bf16.msra.mxu0 %v1994
        %2017 = vmatprep.subr.bf16.mxu0 0
        %2018 = vmatpush1.bf16.msra.mxu0 %v1993
        %2019 = vmatprep.subr.bf16.mxu0 0
        %2020 = vmatpush1.bf16.msra.mxu0 %v1992
        %2021 = vmatprep.subr.bf16.mxu0 0
        %2022 = vmatpush1.bf16.msra.mxu0 %v1991
        %2023 = vmatprep.subr.bf16.mxu0 0
        %2024 = vmatpush2.bf16.msra.mxu0 0
        %2025 = vmatprep.subr.bf16.mxu0 0
        %2026 = vmatpush2.bf16.msra.mxu0 0
        %2027 = vmatprep.subr.bf16.mxu0 0
        %2028 = vmatpush2.bf16.msra.mxu0 0
        %2029 = vmatprep.subr.bf16.mxu0 0
        %2030 = vmatpush2.bf16.msra.mxu0 0
        %2031 = vmatprep.subr.bf16.mxu0 0
        %2032 = vmatpush2.bf16.msra.mxu0 0
        %2033 = vmatprep.subr.bf16.mxu0 0
        %2034 = vmatpush2.bf16.msra.mxu0 0
        %2035 = vmatprep.subr.bf16.mxu0 0
        %2036 = vmatpush2.bf16.msra.mxu0 0
        %2037 = vmatprep.subr.bf16.mxu0 0
        %2038 = vmatpush2.bf16.msra.mxu0 0
        %2039 = vmatprep.mubr.bf16.mxu0 0
        %2040 = vmatmul.mubr.bf16.gmra.mxu0 %v1957
        %v2041 = vpop.f32.mrf.mxu0
        %v2042 = vadd.f32 0.0, %v2041
        %v2043 = vpop.f32.mrf.mxu0
        %v2044 = vpop.f32.mrf.mxu0
        %v2045 = vadd.f32 0.0, %v2044
        %v2046 = vpop.f32.mrf.mxu0
        %2047 = vdwg.mxu0
        %v2048 = vadd.f32 %v1928, %v2042
        %v2049 = vadd.f32 %v1931, %v2045
        %v2050 = vld [vmem:[#allocation2 + $0x8] sm:$0x3]
        %s2051 = scalar_lea.vmem [#allocation9], 832
        %v2052 = vld [vmem:[%s2051] sm:$0xf]
        %v2053 = vld [vmem:[%s2051 + $0x4] sm:$0xf]
        %v2054 = vld [vmem:[%s2051 + $0x8] sm:$0xf]
        %v2055 = vld [vmem:[%s2051 + $0xc] sm:$0xf]
        %v2056 = vld [vmem:[%s2051 + $0x10] sm:$0xf]
        %v2057 = vld [vmem:[%s2051 + $0x14] sm:$0xf]
        %v2058 = vld [vmem:[%s2051 + $0x18] sm:$0xf]
        %v2059 = vld [vmem:[%s2051 + $0x1c] sm:$0xf]
        %v2060 = vld [vmem:[%s2051 + $0x20] sm:$0xf]
        %v2061 = vld [vmem:[%s2051 + $0x24] sm:$0xf]
        %v2062 = vld [vmem:[%s2051 + $0x28] sm:$0xf]
        %v2063 = vld [vmem:[%s2051 + $0x2c] sm:$0xf]
        %v2064 = vld [vmem:[%s2051 + $0x30] sm:$0xf]
        %v2065 = vld [vmem:[%s2051 + $0x34] sm:$0xf]
        %v2066 = vld [vmem:[%s2051 + $0x38] sm:$0xf]
        %v2067 = vld [vmem:[%s2051 + $0x3c] sm:$0xf]
        %v2069 = vunpack.c.l.b16 %v2050
        %v2070 = vpack.c.b16 %v2069, %v2069
        %v2072 = vshrl.u32 %v1954, 16
        %v2074 = vrot.slane %v2072, 1
        %v2075 = vshll.u32 %v1954, 16
        %v2077 = vrot.slane %v2075, 2
        %v2078 = vor.u32 %v2074, %v2077
        %v2080 = vshrl.u32 %v2070, 16
        %v2082 = vrot.slane %v2080, 1
        %v2083 = vshll.u32 %v2070, 16
        %v2085 = vrot.slane %v2083, 2
        %v2086 = vor.u32 %v2082, %v2085
        %v2087 = vsel %vm806, %v2078, %v2086
        %v2105 = vunpack.c.l.b16 %v2052
        %v2106 = vunpack.c.l.b16 %v2053
        %v2107 = vunpack.c.l.b16 %v2054
        %v2108 = vunpack.c.l.b16 %v2055
        %v2109 = vunpack.c.l.b16 %v2056
        %v2110 = vunpack.c.l.b16 %v2057
        %v2111 = vunpack.c.l.b16 %v2058
        %v2112 = vunpack.c.l.b16 %v2059
        %v2113 = vunpack.c.l.b16 %v2060
        %v2114 = vunpack.c.l.b16 %v2061
        %v2115 = vunpack.c.l.b16 %v2062
        %v2116 = vunpack.c.l.b16 %v2063
        %v2117 = vunpack.c.l.b16 %v2064
        %v2118 = vunpack.c.l.b16 %v2065
        %v2119 = vunpack.c.l.b16 %v2066
        %v2120 = vunpack.c.l.b16 %v2067
        %v2121 = vpack.c.b16 %v2106, %v2105
        %v2122 = vpack.c.b16 %v2108, %v2107
        %v2123 = vpack.c.b16 %v2110, %v2109
        %v2124 = vpack.c.b16 %v2112, %v2111
        %v2125 = vpack.c.b16 %v2114, %v2113
        %v2126 = vpack.c.b16 %v2116, %v2115
        %v2127 = vpack.c.b16 %v2118, %v2117
        %v2128 = vpack.c.b16 %v2120, %v2119
        %2137 = vmatprep.subr.bf16.mxu0 0
        %2138 = vmatpush1.bf16.msra.mxu0 %v2128
        %2139 = vmatprep.subr.bf16.mxu0 0
        %2140 = vmatpush1.bf16.msra.mxu0 %v2127
        %2141 = vmatprep.subr.bf16.mxu0 0
        %2142 = vmatpush1.bf16.msra.mxu0 %v2126
        %2143 = vmatprep.subr.bf16.mxu0 0
        %2144 = vmatpush1.bf16.msra.mxu0 %v2125
        %2145 = vmatprep.subr.bf16.mxu0 0
        %2146 = vmatpush1.bf16.msra.mxu0 %v2124
        %2147 = vmatprep.subr.bf16.mxu0 0
        %2148 = vmatpush1.bf16.msra.mxu0 %v2123
        %2149 = vmatprep.subr.bf16.mxu0 0
        %2150 = vmatpush1.bf16.msra.mxu0 %v2122
        %2151 = vmatprep.subr.bf16.mxu0 0
        %2152 = vmatpush1.bf16.msra.mxu0 %v2121
        %2153 = vmatprep.subr.bf16.mxu0 0
        %2154 = vmatpush2.bf16.msra.mxu0 0
        %2155 = vmatprep.subr.bf16.mxu0 0
        %2156 = vmatpush2.bf16.msra.mxu0 0
        %2157 = vmatprep.subr.bf16.mxu0 0
        %2158 = vmatpush2.bf16.msra.mxu0 0
        %2159 = vmatprep.subr.bf16.mxu0 0
        %2160 = vmatpush2.bf16.msra.mxu0 0
        %2161 = vmatprep.subr.bf16.mxu0 0
        %2162 = vmatpush2.bf16.msra.mxu0 0
        %2163 = vmatprep.subr.bf16.mxu0 0
        %2164 = vmatpush2.bf16.msra.mxu0 0
        %2165 = vmatprep.subr.bf16.mxu0 0
        %2166 = vmatpush2.bf16.msra.mxu0 0
        %2167 = vmatprep.subr.bf16.mxu0 0
        %2168 = vmatpush2.bf16.msra.mxu0 0
        %2169 = vmatprep.mubr.bf16.mxu0 0
        %2170 = vmatmul.mubr.bf16.gmra.mxu0 %v2087
        %v2171 = vpop.f32.mrf.mxu0
        %v2172 = vadd.f32 0.0, %v2171
        %v2173 = vpop.f32.mrf.mxu0
        %v2174 = vpop.f32.mrf.mxu0
        %v2175 = vadd.f32 0.0, %v2174
        %v2176 = vpop.f32.mrf.mxu0
        %2177 = vdwg.mxu0
        %v2178 = vadd.f32 %v2048, %v2172
        %v2179 = vadd.f32 %v2049, %v2175
        %v2180 = vld [vmem:[#allocation2] sm:$0xc]
        %s2181 = scalar_lea.vmem [#allocation9], 896
        %v2182 = vld [vmem:[%s2181] sm:$0xf]
        %v2183 = vld [vmem:[%s2181 + $0x4] sm:$0xf]
        %v2184 = vld [vmem:[%s2181 + $0x8] sm:$0xf]
        %v2185 = vld [vmem:[%s2181 + $0xc] sm:$0xf]
        %v2186 = vld [vmem:[%s2181 + $0x10] sm:$0xf]
        %v2187 = vld [vmem:[%s2181 + $0x14] sm:$0xf]
        %v2188 = vld [vmem:[%s2181 + $0x18] sm:$0xf]
        %v2189 = vld [vmem:[%s2181 + $0x1c] sm:$0xf]
        %v2190 = vld [vmem:[%s2181 + $0x20] sm:$0xf]
        %v2191 = vld [vmem:[%s2181 + $0x24] sm:$0xf]
        %v2192 = vld [vmem:[%s2181 + $0x28] sm:$0xf]
        %v2193 = vld [vmem:[%s2181 + $0x2c] sm:$0xf]
        %v2194 = vld [vmem:[%s2181 + $0x30] sm:$0xf]
        %v2195 = vld [vmem:[%s2181 + $0x34] sm:$0xf]
        %v2196 = vld [vmem:[%s2181 + $0x38] sm:$0xf]
        %v2197 = vld [vmem:[%s2181 + $0x3c] sm:$0xf]
        %v2199 = vunpack.c.l.b16 %v2180
        %v2200 = vpack.c.b16 %v1738, %v2199
        %v2201 = vrot.slane %v2200, 2
        %v2202 = vrot.slane %v2070, 2
        %v2203 = vsel %vm937, %v2201, %v2202
        %v2221 = vunpack.c.l.b16 %v2182
        %v2222 = vunpack.c.l.b16 %v2183
        %v2223 = vunpack.c.l.b16 %v2184
        %v2224 = vunpack.c.l.b16 %v2185
        %v2225 = vunpack.c.l.b16 %v2186
        %v2226 = vunpack.c.l.b16 %v2187
        %v2227 = vunpack.c.l.b16 %v2188
        %v2228 = vunpack.c.l.b16 %v2189
        %v2229 = vunpack.c.l.b16 %v2190
        %v2230 = vunpack.c.l.b16 %v2191
        %v2231 = vunpack.c.l.b16 %v2192
        %v2232 = vunpack.c.l.b16 %v2193
        %v2233 = vunpack.c.l.b16 %v2194
        %v2234 = vunpack.c.l.b16 %v2195
        %v2235 = vunpack.c.l.b16 %v2196
        %v2236 = vunpack.c.l.b16 %v2197
        %v2237 = vpack.c.b16 %v2222, %v2221
        %v2238 = vpack.c.b16 %v2224, %v2223
        %v2239 = vpack.c.b16 %v2226, %v2225
        %v2240 = vpack.c.b16 %v2228, %v2227
        %v2241 = vpack.c.b16 %v2230, %v2229
        %v2242 = vpack.c.b16 %v2232, %v2231
        %v2243 = vpack.c.b16 %v2234, %v2233
        %v2244 = vpack.c.b16 %v2236, %v2235
        %2253 = vmatprep.subr.bf16.mxu0 0
        %2254 = vmatpush1.bf16.msra.mxu0 %v2244
        %2255 = vmatprep.subr.bf16.mxu0 0
        %2256 = vmatpush1.bf16.msra.mxu0 %v2243
        %2257 = vmatprep.subr.bf16.mxu0 0
        %2258 = vmatpush1.bf16.msra.mxu0 %v2242
        %2259 = vmatprep.subr.bf16.mxu0 0
        %2260 = vmatpush1.bf16.msra.mxu0 %v2241
        %2261 = vmatprep.subr.bf16.mxu0 0
        %2262 = vmatpush1.bf16.msra.mxu0 %v2240
        %2263 = vmatprep.subr.bf16.mxu0 0
        %2264 = vmatpush1.bf16.msra.mxu0 %v2239
        %2265 = vmatprep.subr.bf16.mxu0 0
        %2266 = vmatpush1.bf16.msra.mxu0 %v2238
        %2267 = vmatprep.subr.bf16.mxu0 0
        %2268 = vmatpush1.bf16.msra.mxu0 %v2237
        %2269 = vmatprep.subr.bf16.mxu0 0
        %2270 = vmatpush2.bf16.msra.mxu0 0
        %2271 = vmatprep.subr.bf16.mxu0 0
        %2272 = vmatpush2.bf16.msra.mxu0 0
        %2273 = vmatprep.subr.bf16.mxu0 0
        %2274 = vmatpush2.bf16.msra.mxu0 0
        %2275 = vmatprep.subr.bf16.mxu0 0
        %2276 = vmatpush2.bf16.msra.mxu0 0
        %2277 = vmatprep.subr.bf16.mxu0 0
        %2278 = vmatpush2.bf16.msra.mxu0 0
        %2279 = vmatprep.subr.bf16.mxu0 0
        %2280 = vmatpush2.bf16.msra.mxu0 0
        %2281 = vmatprep.subr.bf16.mxu0 0
        %2282 = vmatpush2.bf16.msra.mxu0 0
        %2283 = vmatprep.subr.bf16.mxu0 0
        %2284 = vmatpush2.bf16.msra.mxu0 0
        %2285 = vmatprep.mubr.bf16.mxu0 0
        %2286 = vmatmul.mubr.bf16.gmra.mxu0 %v2203
        %v2287 = vpop.f32.mrf.mxu0
        %v2288 = vadd.f32 0.0, %v2287
        %v2289 = vpop.f32.mrf.mxu0
        %v2290 = vpop.f32.mrf.mxu0
        %v2291 = vadd.f32 0.0, %v2290
        %v2292 = vpop.f32.mrf.mxu0
        %2293 = vdwg.mxu0
        %v2294 = vadd.f32 %v2178, %v2288
        %v2295 = vadd.f32 %v2179, %v2291
        %s2296 = scalar_lea.vmem %s3, 2
        %v2297 = vld [vmem:[%s2296] sm:$0x1]
        %v2299 = vlaneseq
        %v2300 = vshrl.u32 %v2299, 7
        %v2301 = vsub.s32 0, %v2300
        %v2302 = vrot.slane %v2297, %v2301
        %v2304 = vadd.f32 %v2294, %v2302
        %v2305 = vadd.f32 %v2295, %v2302
        %v2306 = vadd.f32 %v2304, %v411
        %v2307 = vadd.f32 %v2305, %v414
        %v2308 = vmax.f32 %v2306, 0.0
        %v2309 = vmax.f32 %v2307, 0.0
        %v2310 = vmin.f32 %v2308, 20.0
        %v2311 = vmin.f32 %v2309, 20.0
        %2312 = vst [vmem:[%s276] sm:$0xff] %v2310
        %2313 = vst [vmem:[%s276 + $0x8] sm:$0xff] %v2311
        %s2314 = sand.u32 %s146, 1
        %s2315 = scalar_lea.sflag [#allocation8], %s2314
        %s2316 = sand.u32 %s146, 1
        %s2317 = smul.addr %s2316, 16
        %s2318 = scalar_lea.vmem [#allocation12], %s2317
        // Predicated region
        $region53: #{tpu_custom_call.1} parent=39 // pred_check
          %p2319 = pneg %p156
        $region54: #{tpu_custom_call.1} parent=39 // pred_check_branch
          %2321 = sbr.rel (%p2319) target = $region56
        $region55: #{tpu_custom_call.1} parent=39 // pred_region
          %s2323 = ssub.s32 256, 256
          %2324 = vsyncadd %s2315, %s2323
          %s2325 = smul.addr %s28, 2
          %s2326 = smul.addr %s2325, 128
          %s2327 = scalar_lea.hbm %s6, %s2326
          %s2328 = sshll.u32 %s2318, 4
          %s2329 = int_to_ptr.vmem [resolvable:$true] %s2328
          %2334 = dma.vmem_to_hbm [thread:$0]  %s2329, 256, %s2327, %s2315, 128, 128, 8
        $region56: #{tpu_custom_call.1} parent=39 // pred_fallthru
          _
      $region40: #{tpu_custom_call.1} parent=5 // pred_fallthru
        _
      %p2335 = scmp.le.s32.totalorder 2, %s23
      // Predicated region
      $region57: #{tpu_custom_call.1} parent=5 // pred_check
        %p2336 = pneg %p2335
      $region58: #{tpu_custom_call.1} parent=5 // pred_check_branch
        %2338 = sbr.rel (%p2336) target = $region60
      $region59: #{tpu_custom_call.1} parent=5 // pred_region
        %s2339 = ssub.s32 %s23, 2
        // Predicated region
        $region61: #{tpu_custom_call.1} parent=59 // pred_check
          %p2340 = pneg %p162
        $region62: #{tpu_custom_call.1} parent=59 // pred_check_branch
          %2342 = sbr.rel (%p2340) target = $region64
        $region63: #{tpu_custom_call.1} parent=59 // pred_region
          %s2343 = sand.u32 %s147, 1
          %s2344 = scalar_lea.sflag [#allocation8], %s2343
          %s2345 = sand.u32 %s147, 1
          %s2346 = smul.addr %s2345, 16
          %s2347 = scalar_lea.vmem [#allocation12], %s2346
          %2348 = dma.done %s2344, 256
        $region64: #{tpu_custom_call.1} parent=59 // pred_fallthru
          _
      $region60: #{tpu_custom_call.1} parent=5 // pred_fallthru
        _
    $region6: #{tpu_custom_call.1} parent=1 // loop_footer
      %s27 = sadd.s32 1, %s23
    $region7: #{tpu_custom_call.1} parent=1 // loop_footer_branch
      %22 = sbr.rel target = $region3
    $region8: #{tpu_custom_call.1} parent=1 // loop_exit
      _
    %2349 = vsyncpa [#allocation7], 1
    %s2350 = scalar_lea.sflag [#allocation7], 1
    %2351 = vsyncpa %s2350, 1
    %2352 = vsyncpa [#allocation10], 1
    %2353 = vsyncpa [#allocation8], 1
    %s2354 = scalar_lea.sflag [#allocation8], 1
    %2355 = vsyncpa %s2354, 1

</llo_original>
